<compile_context>
chip_gen: v5e
topology: v5e:2x2
jax: 0.10.0
libtpu: 0.0.40
codegen_flags: <defaults>
</compile_context>

<pallas_src>
import functools
import math

import jax
import jax.numpy as jnp
from jax.experimental import pallas as pl
from jax.experimental.pallas import tpu as pltpu


# ----------------------------- math helpers (shared by kernel and reference) ---

def _layernorm(x, gamma, beta, eps=1e-5):
    mu = jnp.mean(x, axis=-1, keepdims=True)
    var = jnp.mean((x - mu) ** 2, axis=-1, keepdims=True)
    return (x - mu) * jax.lax.rsqrt(var + eps) * gamma + beta


def _gelu_tanh(x):
    # matches torch.nn.GELU(approximate='tanh')
    c = math.sqrt(2.0 / math.pi)
    return 0.5 * x * (1.0 + jnp.tanh(c * (x + 0.044715 * x * x * x)))


# ------------------------------------------------------------------ Pallas kernel

def prenorm_block_kernel(x_ref, wqkv_ref, wo_ref, bo_ref,
                         w1_ref, b1_ref, w2_ref, b2_ref,
                         g1_ref, be1_ref, g2_ref, be2_ref,
                         out_ref, *, num_heads, dk, batch, seq):
    x = x_ref[...]                                  # (M, D) f32, M = batch*seq
    m, d = x.shape

    # ---- pre-norm 1 (f32) ------------------------------------------------------
    h = _layernorm(x, g1_ref[...], be1_ref[...]).astype(jnp.bfloat16)

    # ---- fused QKV projection: one wide bf16 MXU matmul, f32 accumulate --------
    # 1/sqrt(dk) is already folded into the Q columns of wqkv (host-side).
    qkv = jnp.dot(h, wqkv_ref[...], preferred_element_type=jnp.float32)   # (M, 3D)

    # ---- block-diagonal causal mask over the folded batch, built in-kernel ------
    # ok(i, j) <=> (i, j) in the same batch element AND j <= i. Finite -1e30 so a
    # row can never be fully masked into NaN (the diagonal is always valid).
    # Built from iota compares only (no vector integer division).
    ridx = jax.lax.broadcasted_iota(jnp.int32, (m, m), 0)
    cidx = jax.lax.broadcasted_iota(jnp.int32, (m, m), 1)
    same = (ridx < seq) & (cidx < seq)
    for bb in range(1, batch):                      # static unrolled, tiny
        lo, hi = bb * seq, (bb + 1) * seq
        same = same | ((ridx >= lo) & (ridx < hi) & (cidx >= lo) & (cidx < hi))
    neg = jnp.where(same & (cidx <= ridx), 0.0, -1e30).astype(jnp.float32)

    # ---- attention: heads unrolled; each head's output folded straight into the
    # ---- output projection (no merge scratch, no masked lane stores) -----------
    attn = jnp.zeros((m, d), jnp.float32)
    for hh in range(num_heads):                     # static unrolled
        lo, hi = hh * dk, (hh + 1) * dk
        qh = qkv[:, lo:hi].astype(jnp.bfloat16)               # (M, dk)
        kh = qkv[:, d + lo:d + hi].astype(jnp.bfloat16)       # (M, dk)
        vh = qkv[:, 2 * d + lo:2 * d + hi].astype(jnp.bfloat16)

        s = jax.lax.dot_general(qh, kh, (((1,), (1,)), ((), ())),   # q @ k^T, (M, M)
                                preferred_element_type=jnp.float32) + neg
        s = s - jnp.max(s, axis=-1, keepdims=True)            # stable softmax
        p = jnp.exp(s)
        p = p * pl.reciprocal(jnp.sum(p, axis=-1, keepdims=True), approx=True)

        oh = jnp.dot(p.astype(jnp.bfloat16), vh,
                     preferred_element_type=jnp.float32)       # (M, dk)
        # wo_ref is (H, dk, D): head hh uses its own (dk, D) row block -> the merge
        # of head outputs happens inside the MXU accumulation, lane-dense in D.
        attn = attn + jnp.dot(oh.astype(jnp.bfloat16), wo_ref[hh],
                              preferred_element_type=jnp.float32)
    attn = attn + bo_ref[...]                       # output-projection bias

    x1 = x + attn                                   # residual 1 (dropout = 0)

    # ---- pre-norm 2 + MLP -------------------------------------------------------
    h2 = _layernorm(x1, g2_ref[...], be2_ref[...]).astype(jnp.bfloat16)
    z = jnp.dot(h2, w1_ref[...], preferred_element_type=jnp.float32) + b1_ref[...]
    z = _gelu_tanh(z)
    z = jnp.dot(z.astype(jnp.bfloat16), w2_ref[...],
                preferred_element_type=jnp.float32) + b2_ref[...]

    out_ref[...] = x1 + z                           # residual 2 (dropout = 0)


# ------------------------------------------------------------------------ wrapper

def prepare_params(p, *, num_heads):
    """Host-side weight prep:
       * fuse Uq/Uk/Uv into one (D, 3D) bf16 weight (one DMA, one wide MXU matmul),
         with 1/sqrt(dk) pre-folded into the Q columns;
       * reshape wo to (H, dk, D) so each head's rows are a cheap leading-dim index;
       * cast all matmul weights to bf16 (MXU-native, half the weight bytes)."""
    d = p['wq'].shape[0]
    dk = d // num_heads
    scale = 1.0 / math.sqrt(dk)
    wqkv = jnp.concatenate([p['wq'] * scale, p['wk'], p['wv']],
                           axis=1).astype(jnp.bfloat16)
    wo = p['wo'].reshape(num_heads, dk, d).astype(jnp.bfloat16)
    return dict(
        wqkv=wqkv, wo=wo, bo=p['bo'],
        w1=p['w1'].astype(jnp.bfloat16), b1=p['b1'],
        w2=p['w2'].astype(jnp.bfloat16), b2=p['b2'],
        g1=p['g1'], be1=p['be1'], g2=p['g2'], be2=p['be2'],
    )


def _vmem_budget_bytes(m, d, f, num_heads, dk):
    """Scoped-VMEM budget derived from the actual working set, not a magic number.

    Counts double-buffered I/O slabs + weights plus the major in-kernel temporaries,
    with 3x headroom for Mosaic-internal scratch. Floored at 16 MiB (tiny configs),
    capped at 48 MiB to stay safely under v7x's 64 MiB physical VMEM."""
    f32, bf16 = 4, 2
    io = 2 * 2 * m * d * f32                                    # x + out, double-buffered
    weights = 2 * bf16 * (d * 3 * d + num_heads * dk * d + d * f + f * d)
    smalls = 2 * f32 * (8 * d + f)                              # biases / gammas / betas
    acts = f32 * (m * 3 * d + 3 * m * m + m * f + 6 * m * d)    # qkv, scores+p+mask, mlp, temps
    total = io + weights + smalls + acts
    return int(min(max(3 * total, 16 * 1024 * 1024), 48 * 1024 * 1024))


def prenorm_block(x, fp, *, num_heads):
    B, S, D = x.shape
    dk = D // num_heads
    M = B * S
    F = fp['w1'].shape[1]

    # Fold batch into the matmul M dimension: all dense matmuls see M = B*S rows.
    # (reshape is a free metadata op outside the kernel)
    x2 = x.reshape(M, D)

    kernel = functools.partial(prenorm_block_kernel, num_heads=num_heads, dk=dk,
                               batch=B, seq=S)

    def resident(a):
        # Full-array block, constant block index: fetched once, kept resident.
        if a.ndim == 3:
            return pl.BlockSpec(a.shape, lambda i: (0, 0, 0))
        return pl.BlockSpec(a.shape, lambda i: (0, 0))

    out2 = pl.pallas_call(
        kernel,
        out_shape=jax.ShapeDtypeStruct((M, D), jnp.float32),
        grid_spec=pltpu.PrefetchScalarGridSpec(
            num_scalar_prefetch=0,
            grid=(1,),   # whole batch in one fused step (per-step overhead dominates
                         # at this size; see TODO about a >=2 parallel axis for v7x)
            in_specs=[
                pl.BlockSpec((M, D), lambda i: (0, 0)),         # folded tgt slab
                resident(fp['wqkv']), resident(fp['wo']), resident(fp['bo']),
                resident(fp['w1']), resident(fp['b1']),
                resident(fp['w2']), resident(fp['b2']),
                resident(fp['g1']), resident(fp['be1']),
                resident(fp['g2']), resident(fp['be2']),
            ],
            out_specs=pl.BlockSpec((M, D), lambda i: (0, 0)),
        ),
        compiler_params=pltpu.CompilerParams(
            dimension_semantics=("arbitrary",),
            vmem_limit_bytes=_vmem_budget_bytes(M, D, F, num_heads, dk),
        ),
    )(x2, fp['wqkv'], fp['wo'], fp['bo'], fp['w1'], fp['b1'], fp['w2'], fp['b2'],
      fp['g1'], fp['be1'], fp['g2'], fp['be2'])
    return out2.reshape(B, S, D)


# ------------------------------------------------------------- params & reference

def init_params(key, d_model, ffn_hidden):
    ks = jax.random.split(key, 8)
    s = 0.05
    return dict(
        wq=s * jax.random.normal(ks[0], (d_model, d_model), jnp.float32),
        wk=s * jax.random.normal(ks[1], (d_model, d_model), jnp.float32),
        wv=s * jax.random.normal(ks[2], (d_model, d_model), jnp.float32),
        wo=s * jax.random.normal(ks[3], (d_model, d_model), jnp.float32),
        bo=0.02 * jax.random.normal(ks[4], (1, d_model), jnp.float32),
        w1=s * jax.random.normal(ks[5], (d_model, ffn_hidden), jnp.float32),
        b1=0.02 * jax.random.normal(ks[6], (1, ffn_hidden), jnp.float32),
        w2=s * jax.random.normal(ks[7], (ffn_hidden, d_model), jnp.float32),
        b2=jnp.zeros((1, d_model), jnp.float32),
        g1=jnp.ones((1, d_model), jnp.float32),
        be1=jnp.zeros((1, d_model), jnp.float32),
        g2=jnp.ones((1, d_model), jnp.float32),
        be2=jnp.zeros((1, d_model), jnp.float32),
    )


def ref_forward(tgt, p, *, num_heads):
    """Pure-JAX f32 reference for PreNormLogic.forward (causal self-attn MHA,
    GELU(tanh) MLP, dropout = 0, tgt_key_pad_mask = None)."""
    B, n, d = tgt.shape
    dk = d // num_heads
    h = _layernorm(tgt, p['g1'], p['be1'])
    q, k, v = h @ p['wq'], h @ p['wk'], h @ p['wv']
    qh = q.reshape(B, n, num_heads, dk).transpose(0, 2, 1, 3)
    kh = k.reshape(B, n, num_heads, dk).transpose(0, 2, 1, 3)
    vh = v.reshape(B, n, num_heads, dk).transpose(0, 2, 1, 3)
    causal = jnp.triu(jnp.ones((n, n), dtype=bool), k=1)
    s = jnp.einsum('bhqd,bhkd->bhqk', qh, kh) / math.sqrt(dk)
    s = jnp.where(causal, -jnp.inf, s)
    a = jax.nn.softmax(s, axis=-1)
    m = jnp.einsum('bhqk,bhkd->bhqd', a, vh).transpose(0, 2, 1, 3).reshape(B, n, d)
    attn = m @ p['wo'] + p['bo']
    x1 = tgt + attn
    h2 = _layernorm(x1, p['g2'], p['be2'])
    z = _gelu_tanh(h2 @ p['w1'] + p['b1'])
    z = z @ p['w2'] + p['b2']
    return x1 + z


# ---------------------------------------------------------------------------- main

if __name__ == "__main__":
    # Small but lane-dense config (trailing dims are multiples of 128).
    B, S, D = 2, 16, 128
    NUM_HEADS = 4
    FFN_HIDDEN = 256
    # dropout = 0.0, qkv_bias = False, activation = GELU(tanh), pre-norm block.

    key = jax.random.PRNGKey(0)
    k_x, k_p = jax.random.split(key)
    tgt = jax.random.normal(k_x, (B, S, D), jnp.float32)
    params = init_params(k_p, D, FFN_HIDDEN)
    fused = prepare_params(params, num_heads=NUM_HEADS)

    fwd = jax.jit(functools.partial(prenorm_block, num_heads=NUM_HEADS))
    out = jax.block_until_ready(fwd(tgt, fused))

    ref = ref_forward(tgt, params, num_heads=NUM_HEADS)
    assert out.shape == (B, S, D) and out.dtype == jnp.float32
    # Tolerance reflects bf16 matmul inputs + approx reciprocal in the kernel
    # vs. the all-f32 reference.
    assert jnp.allclose(out, ref, atol=3e-2, rtol=3e-2), "mismatch vs JAX reference"

    print("KERNEL_OK")
</pallas_src>

<mosaic_0001>
module attributes {stable_mosaic.version = 11 : i64} {
  func.func @prenorm_block_kernel(%arg0: i32, %arg1: memref<32x128xf32, #tpu.memory_space<vmem>>, %arg2: memref<128x384xbf16, #tpu.memory_space<vmem>>, %arg3: memref<4x32x128xbf16, #tpu.memory_space<vmem>>, %arg4: memref<1x128xf32, #tpu.memory_space<vmem>>, %arg5: memref<128x256xbf16, #tpu.memory_space<vmem>>, %arg6: memref<1x256xf32, #tpu.memory_space<vmem>>, %arg7: memref<256x128xbf16, #tpu.memory_space<vmem>>, %arg8: memref<1x128xf32, #tpu.memory_space<vmem>>, %arg9: memref<1x128xf32, #tpu.memory_space<vmem>>, %arg10: memref<1x128xf32, #tpu.memory_space<vmem>>, %arg11: memref<1x128xf32, #tpu.memory_space<vmem>>, %arg12: memref<1x128xf32, #tpu.memory_space<vmem>>, %arg13: memref<32x128xf32, #tpu.memory_space<vmem>>) attributes {dimension_semantics = [#tpu.dimension_semantics<arbitrary>], iteration_bounds = array<i64: 1>, scalar_prefetch = 0 : i64, scratch_operands = 0 : i64, tpu.core_type = #tpu.core_type<tc>, window_params = [{pipeline_mode = #tpu.pipeline_mode<synchronous>, transform_indices = @transform_0, window_bounds = array<i64: 32, 128>}, {pipeline_mode = #tpu.pipeline_mode<synchronous>, transform_indices = @transform_1, window_bounds = array<i64: 128, 384>}, {pipeline_mode = #tpu.pipeline_mode<synchronous>, transform_indices = @transform_2, window_bounds = array<i64: 4, 32, 128>}, {pipeline_mode = #tpu.pipeline_mode<synchronous>, transform_indices = @transform_3, window_bounds = array<i64: 1, 128>}, {pipeline_mode = #tpu.pipeline_mode<synchronous>, transform_indices = @transform_4, window_bounds = array<i64: 128, 256>}, {pipeline_mode = #tpu.pipeline_mode<synchronous>, transform_indices = @transform_5, window_bounds = array<i64: 1, 256>}, {pipeline_mode = #tpu.pipeline_mode<synchronous>, transform_indices = @transform_6, window_bounds = array<i64: 256, 128>}, {pipeline_mode = #tpu.pipeline_mode<synchronous>, transform_indices = @transform_7, window_bounds = array<i64: 1, 128>}, {pipeline_mode = #tpu.pipeline_mode<synchronous>, transform_indices = @transform_8, window_bounds = array<i64: 1, 128>}, {pipeline_mode = #tpu.pipeline_mode<synchronous>, transform_indices = @transform_9, window_bounds = array<i64: 1, 128>}, {pipeline_mode = #tpu.pipeline_mode<synchronous>, transform_indices = @transform_10, window_bounds = array<i64: 1, 128>}, {pipeline_mode = #tpu.pipeline_mode<synchronous>, transform_indices = @transform_11, window_bounds = array<i64: 1, 128>}, {pipeline_mode = #tpu.pipeline_mode<synchronous>, transform_indices = @transform_12, window_bounds = array<i64: 32, 128>}]} {
    %c0 = arith.constant 0 : index
    %c0_0 = arith.constant 0 : index
    %0 = vector.load %arg1[%c0, %c0_0] : memref<32x128xf32, #tpu.memory_space<vmem>>, vector<32x128xf32>
    %c0_1 = arith.constant 0 : index
    %c0_2 = arith.constant 0 : index
    %1 = vector.load %arg9[%c0_1, %c0_2] : memref<1x128xf32, #tpu.memory_space<vmem>>, vector<1x128xf32>
    %c0_3 = arith.constant 0 : index
    %c0_4 = arith.constant 0 : index
    %2 = vector.load %arg10[%c0_3, %c0_4] : memref<1x128xf32, #tpu.memory_space<vmem>>, vector<1x128xf32>
    %cst = arith.constant dense<0.000000e+00> : vector<32xf32>
    %3 = vector.multi_reduction <add>, %0, %cst [1] : vector<32x128xf32> to vector<32xf32>
    %4 = vector.shape_cast %3 : vector<32xf32> to vector<32x1xf32>
    %cst_5 = arith.constant 1.280000e+02 : f32
    %5 = vector.broadcast %cst_5 : f32 to vector<32x1xf32>
    %6 = arith.divf %4, %5 : vector<32x1xf32>
    %7 = vector.broadcast %6 : vector<32x1xf32> to vector<32x128xf32>
    %8 = arith.subf %0, %7 : vector<32x128xf32>
    %9 = arith.mulf %8, %8 : vector<32x128xf32>
    %cst_6 = arith.constant dense<0.000000e+00> : vector<32xf32>
    %10 = vector.multi_reduction <add>, %9, %cst_6 [1] : vector<32x128xf32> to vector<32xf32>
    %11 = vector.shape_cast %10 : vector<32xf32> to vector<32x1xf32>
    %cst_7 = arith.constant 1.280000e+02 : f32
    %12 = vector.broadcast %cst_7 : f32 to vector<32x1xf32>
    %13 = arith.divf %11, %12 : vector<32x1xf32>
    %14 = vector.broadcast %6 : vector<32x1xf32> to vector<32x128xf32>
    %15 = arith.subf %0, %14 : vector<32x128xf32>
    %cst_8 = arith.constant 9.99999974E-6 : f32
    %16 = vector.broadcast %cst_8 : f32 to vector<32x1xf32>
    %17 = arith.addf %13, %16 : vector<32x1xf32>
    %18 = math.rsqrt %17 : vector<32x1xf32>
    %19 = vector.broadcast %18 : vector<32x1xf32> to vector<32x128xf32>
    %20 = arith.mulf %15, %19 : vector<32x128xf32>
    %21 = vector.broadcast %1 : vector<1x128xf32> to vector<32x128xf32>
    %22 = arith.mulf %20, %21 : vector<32x128xf32>
    %23 = vector.broadcast %2 : vector<1x128xf32> to vector<32x128xf32>
    %24 = arith.addf %22, %23 : vector<32x128xf32>
    %25 = arith.truncf %24 : vector<32x128xf32> to vector<32x128xbf16>
    %c0_9 = arith.constant 0 : index
    %c0_10 = arith.constant 0 : index
    %26 = vector.load %arg2[%c0_9, %c0_10] : memref<128x384xbf16, #tpu.memory_space<vmem>>, vector<128x384xbf16>
    %cst_11 = arith.constant dense<0.000000e+00> : vector<32x384xf32>
    %27 = tpu.matmul %25, %26, %cst_11 {dimension_numbers = #tpu.dot_dimension_numbers<[1], [0], [0], [1], [0, 0, 1, 1], [], []>} : vector<32x128xbf16>, vector<128x384xbf16>, vector<32x384xf32> -> vector<32x384xf32>
    %28 = tpu.iota {dimensions = array<i32: 0>} : vector<32x32xi32>
    %29 = tpu.iota {dimensions = array<i32: 1>} : vector<32x32xi32>
    %c16_i32 = arith.constant 16 : i32
    %30 = vector.broadcast %c16_i32 : i32 to vector<32x32xi32>
    %31 = arith.cmpi slt, %28, %30 : vector<32x32xi32>
    %c16_i32_12 = arith.constant 16 : i32
    %32 = vector.broadcast %c16_i32_12 : i32 to vector<32x32xi32>
    %33 = arith.cmpi slt, %29, %32 : vector<32x32xi32>
    %34 = arith.andi %31, %33 : vector<32x32xi1>
    %c16_i32_13 = arith.constant 16 : i32
    %35 = vector.broadcast %c16_i32_13 : i32 to vector<32x32xi32>
    %36 = arith.cmpi sge, %28, %35 : vector<32x32xi32>
    %c32_i32 = arith.constant 32 : i32
    %37 = vector.broadcast %c32_i32 : i32 to vector<32x32xi32>
    %38 = arith.cmpi slt, %28, %37 : vector<32x32xi32>
    %39 = arith.andi %36, %38 : vector<32x32xi1>
    %c16_i32_14 = arith.constant 16 : i32
    %40 = vector.broadcast %c16_i32_14 : i32 to vector<32x32xi32>
    %41 = arith.cmpi sge, %29, %40 : vector<32x32xi32>
    %42 = arith.andi %39, %41 : vector<32x32xi1>
    %c32_i32_15 = arith.constant 32 : i32
    %43 = vector.broadcast %c32_i32_15 : i32 to vector<32x32xi32>
    %44 = arith.cmpi slt, %29, %43 : vector<32x32xi32>
    %45 = arith.andi %42, %44 : vector<32x32xi1>
    %46 = arith.ori %34, %45 : vector<32x32xi1>
    %47 = arith.cmpi sle, %29, %28 : vector<32x32xi32>
    %48 = arith.andi %46, %47 : vector<32x32xi1>
    %cst_16 = arith.constant 0.000000e+00 : f32
    %cst_17 = arith.constant -1.000000e+30 : f32
    %49 = vector.broadcast %cst_16 : f32 to vector<32x32xf32>
    %50 = vector.broadcast %cst_17 : f32 to vector<32x32xf32>
    %51 = arith.select %48, %49, %50 : vector<32x32xi1>, vector<32x32xf32>
    %cst_18 = arith.constant 0.000000e+00 : f32
    %52 = vector.broadcast %cst_18 : f32 to vector<32x128xf32>
    %53 = vector.extract_strided_slice %27 {offsets = [0, 0], sizes = [32, 32], strides = [1, 1]} : vector<32x384xf32> to vector<32x32xf32>
    %54 = arith.truncf %53 : vector<32x32xf32> to vector<32x32xbf16>
    %55 = vector.extract_strided_slice %27 {offsets = [0, 128], sizes = [32, 32], strides = [1, 1]} : vector<32x384xf32> to vector<32x32xf32>
    %56 = arith.truncf %55 : vector<32x32xf32> to vector<32x32xbf16>
    %57 = vector.extract_strided_slice %27 {offsets = [0, 256], sizes = [32, 32], strides = [1, 1]} : vector<32x384xf32> to vector<32x32xf32>
    %58 = arith.truncf %57 : vector<32x32xf32> to vector<32x32xbf16>
    %cst_19 = arith.constant dense<0.000000e+00> : vector<32x32xf32>
    %59 = tpu.matmul %54, %56, %cst_19 {dimension_numbers = #tpu.dot_dimension_numbers<[1], [1], [0], [0], [0, 0, 1, 0], [], []>} : vector<32x32xbf16>, vector<32x32xbf16>, vector<32x32xf32> -> vector<32x32xf32>
    %60 = arith.addf %59, %51 : vector<32x32xf32>
    %cst_20 = arith.constant dense<0xFF800000> : vector<32xf32>
    %61 = vector.multi_reduction <maximumf>, %60, %cst_20 [1] : vector<32x32xf32> to vector<32xf32>
    %62 = vector.shape_cast %61 : vector<32xf32> to vector<32x1xf32>
    %63 = vector.broadcast %62 : vector<32x1xf32> to vector<32x32xf32>
    %64 = arith.subf %60, %63 : vector<32x32xf32>
    %65 = math.exp %64 : vector<32x32xf32>
    %cst_21 = arith.constant dense<0.000000e+00> : vector<32xf32>
    %66 = vector.multi_reduction <add>, %65, %cst_21 [1] : vector<32x32xf32> to vector<32xf32>
    %67 = vector.shape_cast %66 : vector<32xf32> to vector<32x1xf32>
    %68 = tpu.reciprocal %67 {approx = true} : vector<32x1xf32> -> vector<32x1xf32>
    %69 = vector.broadcast %68 : vector<32x1xf32> to vector<32x32xf32>
    %70 = arith.mulf %65, %69 : vector<32x32xf32>
    %71 = arith.truncf %70 : vector<32x32xf32> to vector<32x32xbf16>
    %cst_22 = arith.constant dense<0.000000e+00> : vector<32x32xf32>
    %72 = tpu.matmul %71, %58, %cst_22 {dimension_numbers = #tpu.dot_dimension_numbers<[1], [0], [0], [1], [0, 0, 1, 1], [], []>} : vector<32x32xbf16>, vector<32x32xbf16>, vector<32x32xf32> -> vector<32x32xf32>
    %73 = arith.truncf %72 : vector<32x32xf32> to vector<32x32xbf16>
    %c0_23 = arith.constant 0 : index
    %c0_24 = arith.constant 0 : index
    %c0_25 = arith.constant 0 : index
    %74 = vector.load %arg3[%c0_23, %c0_24, %c0_25] : memref<4x32x128xbf16, #tpu.memory_space<vmem>>, vector<1x32x128xbf16>
    %75 = vector.shape_cast %74 : vector<1x32x128xbf16> to vector<32x128xbf16>
    %cst_26 = arith.constant dense<0.000000e+00> : vector<32x128xf32>
    %76 = tpu.matmul %73, %75, %cst_26 {dimension_numbers = #tpu.dot_dimension_numbers<[1], [0], [0], [1], [0, 0, 1, 1], [], []>} : vector<32x32xbf16>, vector<32x128xbf16>, vector<32x128xf32> -> vector<32x128xf32>
    %77 = arith.addf %52, %76 : vector<32x128xf32>
    %78 = vector.extract_strided_slice %27 {offsets = [0, 32], sizes = [32, 32], strides = [1, 1]} : vector<32x384xf32> to vector<32x32xf32>
    %79 = arith.truncf %78 : vector<32x32xf32> to vector<32x32xbf16>
    %80 = vector.extract_strided_slice %27 {offsets = [0, 160], sizes = [32, 32], strides = [1, 1]} : vector<32x384xf32> to vector<32x32xf32>
    %81 = arith.truncf %80 : vector<32x32xf32> to vector<32x32xbf16>
    %82 = vector.extract_strided_slice %27 {offsets = [0, 288], sizes = [32, 32], strides = [1, 1]} : vector<32x384xf32> to vector<32x32xf32>
    %83 = arith.truncf %82 : vector<32x32xf32> to vector<32x32xbf16>
    %cst_27 = arith.constant dense<0.000000e+00> : vector<32x32xf32>
    %84 = tpu.matmul %79, %81, %cst_27 {dimension_numbers = #tpu.dot_dimension_numbers<[1], [1], [0], [0], [0, 0, 1, 0], [], []>} : vector<32x32xbf16>, vector<32x32xbf16>, vector<32x32xf32> -> vector<32x32xf32>
    %85 = arith.addf %84, %51 : vector<32x32xf32>
    %cst_28 = arith.constant dense<0xFF800000> : vector<32xf32>
    %86 = vector.multi_reduction <maximumf>, %85, %cst_28 [1] : vector<32x32xf32> to vector<32xf32>
    %87 = vector.shape_cast %86 : vector<32xf32> to vector<32x1xf32>
    %88 = vector.broadcast %87 : vector<32x1xf32> to vector<32x32xf32>
    %89 = arith.subf %85, %88 : vector<32x32xf32>
    %90 = math.exp %89 : vector<32x32xf32>
    %cst_29 = arith.constant dense<0.000000e+00> : vector<32xf32>
    %91 = vector.multi_reduction <add>, %90, %cst_29 [1] : vector<32x32xf32> to vector<32xf32>
    %92 = vector.shape_cast %91 : vector<32xf32> to vector<32x1xf32>
    %93 = tpu.reciprocal %92 {approx = true} : vector<32x1xf32> -> vector<32x1xf32>
    %94 = vector.broadcast %93 : vector<32x1xf32> to vector<32x32xf32>
    %95 = arith.mulf %90, %94 : vector<32x32xf32>
    %96 = arith.truncf %95 : vector<32x32xf32> to vector<32x32xbf16>
    %cst_30 = arith.constant dense<0.000000e+00> : vector<32x32xf32>
    %97 = tpu.matmul %96, %83, %cst_30 {dimension_numbers = #tpu.dot_dimension_numbers<[1], [0], [0], [1], [0, 0, 1, 1], [], []>} : vector<32x32xbf16>, vector<32x32xbf16>, vector<32x32xf32> -> vector<32x32xf32>
    %98 = arith.truncf %97 : vector<32x32xf32> to vector<32x32xbf16>
    %c1 = arith.constant 1 : index
    %c0_31 = arith.constant 0 : index
    %c0_32 = arith.constant 0 : index
    %99 = vector.load %arg3[%c1, %c0_31, %c0_32] : memref<4x32x128xbf16, #tpu.memory_space<vmem>>, vector<1x32x128xbf16>
    %100 = vector.shape_cast %99 : vector<1x32x128xbf16> to vector<32x128xbf16>
    %cst_33 = arith.constant dense<0.000000e+00> : vector<32x128xf32>
    %101 = tpu.matmul %98, %100, %cst_33 {dimension_numbers = #tpu.dot_dimension_numbers<[1], [0], [0], [1], [0, 0, 1, 1], [], []>} : vector<32x32xbf16>, vector<32x128xbf16>, vector<32x128xf32> -> vector<32x128xf32>
    %102 = arith.addf %77, %101 : vector<32x128xf32>
    %103 = vector.extract_strided_slice %27 {offsets = [0, 64], sizes = [32, 32], strides = [1, 1]} : vector<32x384xf32> to vector<32x32xf32>
    %104 = arith.truncf %103 : vector<32x32xf32> to vector<32x32xbf16>
    %105 = vector.extract_strided_slice %27 {offsets = [0, 192], sizes = [32, 32], strides = [1, 1]} : vector<32x384xf32> to vector<32x32xf32>
    %106 = arith.truncf %105 : vector<32x32xf32> to vector<32x32xbf16>
    %107 = vector.extract_strided_slice %27 {offsets = [0, 320], sizes = [32, 32], strides = [1, 1]} : vector<32x384xf32> to vector<32x32xf32>
    %108 = arith.truncf %107 : vector<32x32xf32> to vector<32x32xbf16>
    %cst_34 = arith.constant dense<0.000000e+00> : vector<32x32xf32>
    %109 = tpu.matmul %104, %106, %cst_34 {dimension_numbers = #tpu.dot_dimension_numbers<[1], [1], [0], [0], [0, 0, 1, 0], [], []>} : vector<32x32xbf16>, vector<32x32xbf16>, vector<32x32xf32> -> vector<32x32xf32>
    %110 = arith.addf %109, %51 : vector<32x32xf32>
    %cst_35 = arith.constant dense<0xFF800000> : vector<32xf32>
    %111 = vector.multi_reduction <maximumf>, %110, %cst_35 [1] : vector<32x32xf32> to vector<32xf32>
    %112 = vector.shape_cast %111 : vector<32xf32> to vector<32x1xf32>
    %113 = vector.broadcast %112 : vector<32x1xf32> to vector<32x32xf32>
    %114 = arith.subf %110, %113 : vector<32x32xf32>
    %115 = math.exp %114 : vector<32x32xf32>
    %cst_36 = arith.constant dense<0.000000e+00> : vector<32xf32>
    %116 = vector.multi_reduction <add>, %115, %cst_36 [1] : vector<32x32xf32> to vector<32xf32>
    %117 = vector.shape_cast %116 : vector<32xf32> to vector<32x1xf32>
    %118 = tpu.reciprocal %117 {approx = true} : vector<32x1xf32> -> vector<32x1xf32>
    %119 = vector.broadcast %118 : vector<32x1xf32> to vector<32x32xf32>
    %120 = arith.mulf %115, %119 : vector<32x32xf32>
    %121 = arith.truncf %120 : vector<32x32xf32> to vector<32x32xbf16>
    %cst_37 = arith.constant dense<0.000000e+00> : vector<32x32xf32>
    %122 = tpu.matmul %121, %108, %cst_37 {dimension_numbers = #tpu.dot_dimension_numbers<[1], [0], [0], [1], [0, 0, 1, 1], [], []>} : vector<32x32xbf16>, vector<32x32xbf16>, vector<32x32xf32> -> vector<32x32xf32>
    %123 = arith.truncf %122 : vector<32x32xf32> to vector<32x32xbf16>
    %c2 = arith.constant 2 : index
    %c0_38 = arith.constant 0 : index
    %c0_39 = arith.constant 0 : index
    %124 = vector.load %arg3[%c2, %c0_38, %c0_39] : memref<4x32x128xbf16, #tpu.memory_space<vmem>>, vector<1x32x128xbf16>
    %125 = vector.shape_cast %124 : vector<1x32x128xbf16> to vector<32x128xbf16>
    %cst_40 = arith.constant dense<0.000000e+00> : vector<32x128xf32>
    %126 = tpu.matmul %123, %125, %cst_40 {dimension_numbers = #tpu.dot_dimension_numbers<[1], [0], [0], [1], [0, 0, 1, 1], [], []>} : vector<32x32xbf16>, vector<32x128xbf16>, vector<32x128xf32> -> vector<32x128xf32>
    %127 = arith.addf %102, %126 : vector<32x128xf32>
    %128 = vector.extract_strided_slice %27 {offsets = [0, 96], sizes = [32, 32], strides = [1, 1]} : vector<32x384xf32> to vector<32x32xf32>
    %129 = arith.truncf %128 : vector<32x32xf32> to vector<32x32xbf16>
    %130 = vector.extract_strided_slice %27 {offsets = [0, 224], sizes = [32, 32], strides = [1, 1]} : vector<32x384xf32> to vector<32x32xf32>
    %131 = arith.truncf %130 : vector<32x32xf32> to vector<32x32xbf16>
    %132 = vector.extract_strided_slice %27 {offsets = [0, 352], sizes = [32, 32], strides = [1, 1]} : vector<32x384xf32> to vector<32x32xf32>
    %133 = arith.truncf %132 : vector<32x32xf32> to vector<32x32xbf16>
    %cst_41 = arith.constant dense<0.000000e+00> : vector<32x32xf32>
    %134 = tpu.matmul %129, %131, %cst_41 {dimension_numbers = #tpu.dot_dimension_numbers<[1], [1], [0], [0], [0, 0, 1, 0], [], []>} : vector<32x32xbf16>, vector<32x32xbf16>, vector<32x32xf32> -> vector<32x32xf32>
    %135 = arith.addf %134, %51 : vector<32x32xf32>
    %cst_42 = arith.constant dense<0xFF800000> : vector<32xf32>
    %136 = vector.multi_reduction <maximumf>, %135, %cst_42 [1] : vector<32x32xf32> to vector<32xf32>
    %137 = vector.shape_cast %136 : vector<32xf32> to vector<32x1xf32>
    %138 = vector.broadcast %137 : vector<32x1xf32> to vector<32x32xf32>
    %139 = arith.subf %135, %138 : vector<32x32xf32>
    %140 = math.exp %139 : vector<32x32xf32>
    %cst_43 = arith.constant dense<0.000000e+00> : vector<32xf32>
    %141 = vector.multi_reduction <add>, %140, %cst_43 [1] : vector<32x32xf32> to vector<32xf32>
    %142 = vector.shape_cast %141 : vector<32xf32> to vector<32x1xf32>
    %143 = tpu.reciprocal %142 {approx = true} : vector<32x1xf32> -> vector<32x1xf32>
    %144 = vector.broadcast %143 : vector<32x1xf32> to vector<32x32xf32>
    %145 = arith.mulf %140, %144 : vector<32x32xf32>
    %146 = arith.truncf %145 : vector<32x32xf32> to vector<32x32xbf16>
    %cst_44 = arith.constant dense<0.000000e+00> : vector<32x32xf32>
    %147 = tpu.matmul %146, %133, %cst_44 {dimension_numbers = #tpu.dot_dimension_numbers<[1], [0], [0], [1], [0, 0, 1, 1], [], []>} : vector<32x32xbf16>, vector<32x32xbf16>, vector<32x32xf32> -> vector<32x32xf32>
    %148 = arith.truncf %147 : vector<32x32xf32> to vector<32x32xbf16>
    %c3 = arith.constant 3 : index
    %c0_45 = arith.constant 0 : index
    %c0_46 = arith.constant 0 : index
    %149 = vector.load %arg3[%c3, %c0_45, %c0_46] : memref<4x32x128xbf16, #tpu.memory_space<vmem>>, vector<1x32x128xbf16>
    %150 = vector.shape_cast %149 : vector<1x32x128xbf16> to vector<32x128xbf16>
    %cst_47 = arith.constant dense<0.000000e+00> : vector<32x128xf32>
    %151 = tpu.matmul %148, %150, %cst_47 {dimension_numbers = #tpu.dot_dimension_numbers<[1], [0], [0], [1], [0, 0, 1, 1], [], []>} : vector<32x32xbf16>, vector<32x128xbf16>, vector<32x128xf32> -> vector<32x128xf32>
    %152 = arith.addf %127, %151 : vector<32x128xf32>
    %c0_48 = arith.constant 0 : index
    %c0_49 = arith.constant 0 : index
    %153 = vector.load %arg4[%c0_48, %c0_49] : memref<1x128xf32, #tpu.memory_space<vmem>>, vector<1x128xf32>
    %154 = vector.broadcast %153 : vector<1x128xf32> to vector<32x128xf32>
    %155 = arith.addf %152, %154 : vector<32x128xf32>
    %156 = arith.addf %0, %155 : vector<32x128xf32>
    %c0_50 = arith.constant 0 : index
    %c0_51 = arith.constant 0 : index
    %157 = vector.load %arg11[%c0_50, %c0_51] : memref<1x128xf32, #tpu.memory_space<vmem>>, vector<1x128xf32>
    %c0_52 = arith.constant 0 : index
    %c0_53 = arith.constant 0 : index
    %158 = vector.load %arg12[%c0_52, %c0_53] : memref<1x128xf32, #tpu.memory_space<vmem>>, vector<1x128xf32>
    %cst_54 = arith.constant dense<0.000000e+00> : vector<32xf32>
    %159 = vector.multi_reduction <add>, %156, %cst_54 [1] : vector<32x128xf32> to vector<32xf32>
    %160 = vector.shape_cast %159 : vector<32xf32> to vector<32x1xf32>
    %cst_55 = arith.constant 1.280000e+02 : f32
    %161 = vector.broadcast %cst_55 : f32 to vector<32x1xf32>
    %162 = arith.divf %160, %161 : vector<32x1xf32>
    %163 = vector.broadcast %162 : vector<32x1xf32> to vector<32x128xf32>
    %164 = arith.subf %156, %163 : vector<32x128xf32>
    %165 = arith.mulf %164, %164 : vector<32x128xf32>
    %cst_56 = arith.constant dense<0.000000e+00> : vector<32xf32>
    %166 = vector.multi_reduction <add>, %165, %cst_56 [1] : vector<32x128xf32> to vector<32xf32>
    %167 = vector.shape_cast %166 : vector<32xf32> to vector<32x1xf32>
    %cst_57 = arith.constant 1.280000e+02 : f32
    %168 = vector.broadcast %cst_57 : f32 to vector<32x1xf32>
    %169 = arith.divf %167, %168 : vector<32x1xf32>
    %170 = vector.broadcast %162 : vector<32x1xf32> to vector<32x128xf32>
    %171 = arith.subf %156, %170 : vector<32x128xf32>
    %cst_58 = arith.constant 9.99999974E-6 : f32
    %172 = vector.broadcast %cst_58 : f32 to vector<32x1xf32>
    %173 = arith.addf %169, %172 : vector<32x1xf32>
    %174 = math.rsqrt %173 : vector<32x1xf32>
    %175 = vector.broadcast %174 : vector<32x1xf32> to vector<32x128xf32>
    %176 = arith.mulf %171, %175 : vector<32x128xf32>
    %177 = vector.broadcast %157 : vector<1x128xf32> to vector<32x128xf32>
    %178 = arith.mulf %176, %177 : vector<32x128xf32>
    %179 = vector.broadcast %158 : vector<1x128xf32> to vector<32x128xf32>
    %180 = arith.addf %178, %179 : vector<32x128xf32>
    %181 = arith.truncf %180 : vector<32x128xf32> to vector<32x128xbf16>
    %c0_59 = arith.constant 0 : index
    %c0_60 = arith.constant 0 : index
    %182 = vector.load %arg5[%c0_59, %c0_60] : memref<128x256xbf16, #tpu.memory_space<vmem>>, vector<128x256xbf16>
    %cst_61 = arith.constant dense<0.000000e+00> : vector<32x256xf32>
    %183 = tpu.matmul %181, %182, %cst_61 {dimension_numbers = #tpu.dot_dimension_numbers<[1], [0], [0], [1], [0, 0, 1, 1], [], []>} : vector<32x128xbf16>, vector<128x256xbf16>, vector<32x256xf32> -> vector<32x256xf32>
    %c0_62 = arith.constant 0 : index
    %c0_63 = arith.constant 0 : index
    %184 = vector.load %arg6[%c0_62, %c0_63] : memref<1x256xf32, #tpu.memory_space<vmem>>, vector<1x256xf32>
    %185 = vector.broadcast %184 : vector<1x256xf32> to vector<32x256xf32>
    %186 = arith.addf %183, %185 : vector<32x256xf32>
    %cst_64 = arith.constant 5.000000e-01 : f32
    %187 = vector.broadcast %cst_64 : f32 to vector<32x256xf32>
    %188 = arith.mulf %187, %186 : vector<32x256xf32>
    %cst_65 = arith.constant 4.471500e-02 : f32
    %189 = vector.broadcast %cst_65 : f32 to vector<32x256xf32>
    %190 = arith.mulf %189, %186 : vector<32x256xf32>
    %191 = arith.mulf %190, %186 : vector<32x256xf32>
    %192 = arith.mulf %191, %186 : vector<32x256xf32>
    %193 = arith.addf %186, %192 : vector<32x256xf32>
    %cst_66 = arith.constant 0.797884583 : f32
    %194 = vector.broadcast %cst_66 : f32 to vector<32x256xf32>
    %195 = arith.mulf %194, %193 : vector<32x256xf32>
    %196 = math.tanh %195 : vector<32x256xf32>
    %cst_67 = arith.constant 1.000000e+00 : f32
    %197 = vector.broadcast %cst_67 : f32 to vector<32x256xf32>
    %198 = arith.addf %197, %196 : vector<32x256xf32>
    %199 = arith.mulf %188, %198 : vector<32x256xf32>
    %200 = arith.truncf %199 : vector<32x256xf32> to vector<32x256xbf16>
    %c0_68 = arith.constant 0 : index
    %c0_69 = arith.constant 0 : index
    %201 = vector.load %arg7[%c0_68, %c0_69] : memref<256x128xbf16, #tpu.memory_space<vmem>>, vector<256x128xbf16>
    %cst_70 = arith.constant dense<0.000000e+00> : vector<32x128xf32>
    %202 = tpu.matmul %200, %201, %cst_70 {dimension_numbers = #tpu.dot_dimension_numbers<[1], [0], [0], [1], [0, 0, 1, 1], [], []>} : vector<32x256xbf16>, vector<256x128xbf16>, vector<32x128xf32> -> vector<32x128xf32>
    %c0_71 = arith.constant 0 : index
    %c0_72 = arith.constant 0 : index
    %203 = vector.load %arg8[%c0_71, %c0_72] : memref<1x128xf32, #tpu.memory_space<vmem>>, vector<1x128xf32>
    %204 = vector.broadcast %203 : vector<1x128xf32> to vector<32x128xf32>
    %205 = arith.addf %202, %204 : vector<32x128xf32>
    %206 = arith.addf %156, %205 : vector<32x128xf32>
    %c0_73 = arith.constant 0 : index
    %c0_74 = arith.constant 0 : index
    %207 = vector.load %arg13[%c0_73, %c0_74] : memref<32x128xf32, #tpu.memory_space<vmem>>, vector<32x128xf32>
    tpu.vector_store %arg13[%c0_73, %c0_74], %206 {strides = array<i32>} : memref<32x128xf32, #tpu.memory_space<vmem>>, vector<32x128xf32>,
    return
  }
  func.func @transform_0(%arg0: i32) -> (i32, i32) {
    %c0_i32 = arith.constant 0 : i32
    %c0_i32_0 = arith.constant 0 : i32
    %c0_i32_1 = arith.constant 0 : i32
    return %c0_i32, %c0_i32_0 : i32, i32
  }
  func.func @transform_1(%arg0: i32) -> (i32, i32) {
    %c0_i32 = arith.constant 0 : i32
    %c0_i32_0 = arith.constant 0 : i32
    %c0_i32_1 = arith.constant 0 : i32
    return %c0_i32, %c0_i32_0 : i32, i32
  }
  func.func @transform_2(%arg0: i32) -> (i32, i32, i32) {
    %c0_i32 = arith.constant 0 : i32
    %c0_i32_0 = arith.constant 0 : i32
    %c0_i32_1 = arith.constant 0 : i32
    %c0_i32_2 = arith.constant 0 : i32
    return %c0_i32, %c0_i32_0, %c0_i32_1 : i32, i32, i32
  }
  func.func @transform_3(%arg0: i32) -> (i32, i32) {
    %c0_i32 = arith.constant 0 : i32
    %c0_i32_0 = arith.constant 0 : i32
    %c0_i32_1 = arith.constant 0 : i32
    return %c0_i32, %c0_i32_0 : i32, i32
  }
  func.func @transform_4(%arg0: i32) -> (i32, i32) {
    %c0_i32 = arith.constant 0 : i32
    %c0_i32_0 = arith.constant 0 : i32
    %c0_i32_1 = arith.constant 0 : i32
    return %c0_i32, %c0_i32_0 : i32, i32
  }
  func.func @transform_5(%arg0: i32) -> (i32, i32) {
    %c0_i32 = arith.constant 0 : i32
    %c0_i32_0 = arith.constant 0 : i32
    %c0_i32_1 = arith.constant 0 : i32
    return %c0_i32, %c0_i32_0 : i32, i32
  }
  func.func @transform_6(%arg0: i32) -> (i32, i32) {
    %c0_i32 = arith.constant 0 : i32
    %c0_i32_0 = arith.constant 0 : i32
    %c0_i32_1 = arith.constant 0 : i32
    return %c0_i32, %c0_i32_0 : i32, i32
  }
  func.func @transform_7(%arg0: i32) -> (i32, i32) {
    %c0_i32 = arith.constant 0 : i32
    %c0_i32_0 = arith.constant 0 : i32
    %c0_i32_1 = arith.constant 0 : i32
    return %c0_i32, %c0_i32_0 : i32, i32
  }
  func.func @transform_8(%arg0: i32) -> (i32, i32) {
    %c0_i32 = arith.constant 0 : i32
    %c0_i32_0 = arith.constant 0 : i32
    %c0_i32_1 = arith.constant 0 : i32
    return %c0_i32, %c0_i32_0 : i32, i32
  }
  func.func @transform_9(%arg0: i32) -> (i32, i32) {
    %c0_i32 = arith.constant 0 : i32
    %c0_i32_0 = arith.constant 0 : i32
    %c0_i32_1 = arith.constant 0 : i32
    return %c0_i32, %c0_i32_0 : i32, i32
  }
  func.func @transform_10(%arg0: i32) -> (i32, i32) {
    %c0_i32 = arith.constant 0 : i32
    %c0_i32_0 = arith.constant 0 : i32
    %c0_i32_1 = arith.constant 0 : i32
    return %c0_i32, %c0_i32_0 : i32, i32
  }
  func.func @transform_11(%arg0: i32) -> (i32, i32) {
    %c0_i32 = arith.constant 0 : i32
    %c0_i32_0 = arith.constant 0 : i32
    %c0_i32_1 = arith.constant 0 : i32
    return %c0_i32, %c0_i32_0 : i32, i32
  }
  func.func @transform_12(%arg0: i32) -> (i32, i32) {
    %c0_i32 = arith.constant 0 : i32
    %c0_i32_0 = arith.constant 0 : i32
    %c0_i32_1 = arith.constant 0 : i32
    return %c0_i32, %c0_i32_0 : i32, i32
  }
}

</mosaic_0001>

<llo_original>
// kernel: prenorm_block.1
$region0: #{prenorm_block.1}
  #allocation0 [shape = 'u32[]', space=smem, size = 0x4, offset = 0x4, fixed_abs, tag = 'smem constant byte address 0x4 - core index']
  #allocation1 [shape = 'u32[72,128]{1,0:T(1,128)}', space=vmem, size = 0x9000, scoped, tag = 'internal scratch']
  %s0 = inlined_call_operand.hbm [shape: f32[32,128], index: 0, kind: input, shape index: {}]
  %s1 = inlined_call_operand.hbm [shape: bf16[128,384], index: 1, kind: input, shape index: {}]
  %s2 = inlined_call_operand.hbm [shape: bf16[4,32,128], index: 2, kind: input, shape index: {}]
  %s3 = inlined_call_operand.vmem [shape: f32[1,128], index: 3, kind: input, shape index: {}]
  %s4 = inlined_call_operand.hbm [shape: bf16[128,256], index: 4, kind: input, shape index: {}]
  %s5 = inlined_call_operand.hbm [shape: f32[1,256], index: 5, kind: input, shape index: {}]
  %s6 = inlined_call_operand.hbm [shape: bf16[256,128], index: 6, kind: input, shape index: {}]
  %s7 = inlined_call_operand.vmem [shape: f32[1,128], index: 7, kind: input, shape index: {}]
  %s8 = inlined_call_operand.vmem [shape: f32[1,128], index: 8, kind: input, shape index: {}]
  %s9 = inlined_call_operand.hbm [shape: f32[1,128], index: 9, kind: input, shape index: {}]
  %s10 = inlined_call_operand.vmem [shape: f32[1,128], index: 10, kind: input, shape index: {}]
  %s11 = inlined_call_operand.hbm [shape: f32[1,128], index: 11, kind: input, shape index: {}]
  %s12 = inlined_call_operand.hbm [shape: f32[32,128], index: 12, kind: output, shape index: {}]
  %s13 = sld [smem:[#allocation0]]
  $region90: #{prenorm_block.1} parent=0
    _
  %s15 = ssub.s32 1, %s13
  %s16 = scalar_select 0, %s15, %s13
  $region1: #{prenorm_block.1} parent=0
    #allocation2 [shape = 'u8[16384]{0}', space=vmem, size = 0x4000, scoped, tag = 'input window, operand 0, single buffered']
    #allocation3 [shape = 's32[1]{0}', space=sflag, size = 0x4, scoped, tag = 'scoped memory for prenorm_block.1']
    #allocation4 [shape = 's32[1]{0}', space=sflag, size = 0x4, scoped, tag = 'scoped memory for prenorm_block.1']
    #allocation5 [shape = 'u8[98304]{0}', space=vmem, size = 0x18000, scoped, tag = 'input window, operand 1, single buffered']
    #allocation6 [shape = 's32[1]{0}', space=sflag, size = 0x4, scoped, tag = 'scoped memory for prenorm_block.1']
    #allocation7 [shape = 'u8[32768]{0}', space=vmem, size = 0x8000, scoped, tag = 'input window, operand 2, single buffered']
    #allocation8 [shape = 'u8[65536]{0}', space=vmem, size = 0x10000, scoped, tag = 'input window, operand 4, single buffered']
    #allocation9 [shape = 's32[1]{0}', space=sflag, size = 0x4, scoped, tag = 'scoped memory for prenorm_block.1']
    #allocation10 [shape = 'u8[1024]{0}', space=vmem, size = 0x400, scoped, tag = 'input window, operand 5, single buffered']
    #allocation11 [shape = 'u8[65536]{0}', space=vmem, size = 0x10000, scoped, tag = 'input window, operand 6, single buffered']
    #allocation12 [shape = 's32[1]{0}', space=sflag, size = 0x4, scoped, tag = 'scoped memory for prenorm_block.1']
    #allocation13 [shape = 'u8[512]{0}', space=vmem, size = 0x400, scoped, tag = 'input window, operand 9, single buffered']
    #allocation14 [shape = 'u8[512]{0}', space=vmem, size = 0x400, scoped, tag = 'input window, operand 11, single buffered']
    #allocation15 [shape = 's32[1]{0}', space=sflag, size = 0x4, scoped, tag = 'scoped memory for prenorm_block.1']
    #allocation16 [shape = 'u8[16384]{0}', space=vmem, size = 0x4000, scoped, tag = 'output window, operand 0, single buffered']
    %17 = vsyncpa [#allocation3], 0
    %18 = vsyncpa [#allocation6], 0
    %19 = vsyncpa [#allocation9], 0
    %20 = vsyncpa [#allocation12], 0
    %21 = vsyncpa [#allocation15], 0
    %22 = vsyncpa [#allocation4], 0
    // Predicated region
    $region2: #{prenorm_block.1} parent=1 // pred_check
      _
    $region3: #{prenorm_block.1} parent=1 // pred_check_branch
      %24 = sbr.rel (0) target = $region5
    $region4: #{prenorm_block.1} parent=1 // pred_region
      %26 = vsyncadd [#allocation3], 0
      %s27 = sshll.u32 %s0, 4
      %s28 = int_to_ptr.hbm [resolvable:$true] %s27
      %s29 = sshll.u32 [#allocation2], 4
      %s30 = int_to_ptr.vmem [resolvable:$true] %s29
      %35 = dma.hbm_to_vmem [thread:$0]  %s28, 512, %s30, [#allocation3], 128, 128, 8
    $region5: #{prenorm_block.1} parent=1 // pred_fallthru
      _
    // Predicated region
    $region6: #{prenorm_block.1} parent=1 // pred_check
      _
    $region7: #{prenorm_block.1} parent=1 // pred_check_branch
      %37 = sbr.rel (0) target = $region9
    $region8: #{prenorm_block.1} parent=1 // pred_region
      %39 = vsyncadd [#allocation6], 0
      %s40 = sshll.u32 %s1, 4
      %s41 = int_to_ptr.hbm [resolvable:$true] %s40
      %s42 = sshll.u32 [#allocation5], 4
      %s43 = int_to_ptr.vmem [resolvable:$true] %s42
      %48 = dma.hbm_to_vmem [thread:$0]  %s41, 3072, %s43, [#allocation6], 192, 192, 12
    $region9: #{prenorm_block.1} parent=1 // pred_fallthru
      _
    // Predicated region
    $region10: #{prenorm_block.1} parent=1 // pred_check
      _
    $region11: #{prenorm_block.1} parent=1 // pred_check_branch
      %50 = sbr.rel (0) target = $region13
    $region12: #{prenorm_block.1} parent=1 // pred_region
      %52 = vsyncadd [#allocation6], 0
      %s53 = sshll.u32 %s2, 4
      %s54 = int_to_ptr.hbm [resolvable:$true] %s53
      %s55 = sshll.u32 [#allocation7], 4
      %s56 = int_to_ptr.vmem [resolvable:$true] %s55
      %61 = dma.hbm_to_vmem [thread:$0]  %s54, 1024, %s56, [#allocation6], 64, 64, 4
    $region13: #{prenorm_block.1} parent=1 // pred_fallthru
      _
    // Predicated region
    $region14: #{prenorm_block.1} parent=1 // pred_check
      _
    $region15: #{prenorm_block.1} parent=1 // pred_check_branch
      %63 = sbr.rel (0) target = $region17
    $region16: #{prenorm_block.1} parent=1 // pred_region
      _
    $region17: #{prenorm_block.1} parent=1 // pred_fallthru
      _
    // Predicated region
    $region18: #{prenorm_block.1} parent=1 // pred_check
      _
    $region19: #{prenorm_block.1} parent=1 // pred_check_branch
      %65 = sbr.rel (0) target = $region21
    $region20: #{prenorm_block.1} parent=1 // pred_region
      %67 = vsyncadd [#allocation9], 0
      %s68 = sshll.u32 %s4, 4
      %s69 = int_to_ptr.hbm [resolvable:$true] %s68
      %s70 = sshll.u32 [#allocation8], 4
      %s71 = int_to_ptr.vmem [resolvable:$true] %s70
      %76 = dma.hbm_to_vmem [thread:$0]  %s69, 2048, %s71, [#allocation9], 128, 128, 8
    $region21: #{prenorm_block.1} parent=1 // pred_fallthru
      _
    // Predicated region
    $region22: #{prenorm_block.1} parent=1 // pred_check
      _
    $region23: #{prenorm_block.1} parent=1 // pred_check_branch
      %78 = sbr.rel (0) target = $region25
    $region24: #{prenorm_block.1} parent=1 // pred_region
      %80 = vsyncadd [#allocation9], 0
      %s82 = sshll.u32 %s5, 4
      %s83 = int_to_ptr.hbm [resolvable:$true] %s82
      %s84 = sshll.u32 [#allocation10], 4
      %s85 = int_to_ptr.vmem [resolvable:$true] %s84
      %87 = dma.hbm_to_vmem [thread:$0]  %s83, 32, %s85, [#allocation9]
    $region25: #{prenorm_block.1} parent=1 // pred_fallthru
      _
    // Predicated region
    $region26: #{prenorm_block.1} parent=1 // pred_check
      _
    $region27: #{prenorm_block.1} parent=1 // pred_check_branch
      %89 = sbr.rel (0) target = $region29
    $region28: #{prenorm_block.1} parent=1 // pred_region
      %91 = vsyncadd [#allocation12], 0
      %s92 = sshll.u32 %s6, 4
      %s93 = int_to_ptr.hbm [resolvable:$true] %s92
      %s94 = sshll.u32 [#allocation11], 4
      %s95 = int_to_ptr.vmem [resolvable:$true] %s94
      %100 = dma.hbm_to_vmem [thread:$0]  %s93, 2048, %s95, [#allocation12], 64, 64, 4
    $region29: #{prenorm_block.1} parent=1 // pred_fallthru
      _
    // Predicated region
    $region30: #{prenorm_block.1} parent=1 // pred_check
      _
    $region31: #{prenorm_block.1} parent=1 // pred_check_branch
      %102 = sbr.rel (0) target = $region33
    $region32: #{prenorm_block.1} parent=1 // pred_region
      _
    $region33: #{prenorm_block.1} parent=1 // pred_fallthru
      _
    // Predicated region
    $region34: #{prenorm_block.1} parent=1 // pred_check
      _
    $region35: #{prenorm_block.1} parent=1 // pred_check_branch
      %104 = sbr.rel (0) target = $region37
    $region36: #{prenorm_block.1} parent=1 // pred_region
      _
    $region37: #{prenorm_block.1} parent=1 // pred_fallthru
      _
    // Predicated region
    $region38: #{prenorm_block.1} parent=1 // pred_check
      _
    $region39: #{prenorm_block.1} parent=1 // pred_check_branch
      %106 = sbr.rel (0) target = $region41
    $region40: #{prenorm_block.1} parent=1 // pred_region
      %108 = vsyncadd [#allocation12], 0
      %s110 = sshll.u32 %s9, 4
      %s111 = int_to_ptr.hbm [resolvable:$true] %s110
      %s112 = sshll.u32 [#allocation13], 4
      %s113 = int_to_ptr.vmem [resolvable:$true] %s112
      %115 = dma.hbm_to_vmem [thread:$0]  %s111, 16, %s113, [#allocation12]
    $region41: #{prenorm_block.1} parent=1 // pred_fallthru
      _
    // Predicated region
    $region42: #{prenorm_block.1} parent=1 // pred_check
      _
    $region43: #{prenorm_block.1} parent=1 // pred_check_branch
      %117 = sbr.rel (0) target = $region45
    $region44: #{prenorm_block.1} parent=1 // pred_region
      _
    $region45: #{prenorm_block.1} parent=1 // pred_fallthru
      _
    // Predicated region
    $region46: #{prenorm_block.1} parent=1 // pred_check
      _
    $region47: #{prenorm_block.1} parent=1 // pred_check_branch
      %119 = sbr.rel (0) target = $region49
    $region48: #{prenorm_block.1} parent=1 // pred_region
      %121 = vsyncadd [#allocation15], 0
      %s123 = sshll.u32 %s11, 4
      %s124 = int_to_ptr.hbm [resolvable:$true] %s123
      %s125 = sshll.u32 [#allocation14], 4
      %s126 = int_to_ptr.vmem [resolvable:$true] %s125
      %128 = dma.hbm_to_vmem [thread:$0]  %s124, 16, %s126, [#allocation15]
    $region49: #{prenorm_block.1} parent=1 // pred_fallthru
      _
    // Predicated region
    $region50: #{prenorm_block.1} parent=1 // pred_check
      _
    $region51: #{prenorm_block.1} parent=1 // pred_check_branch
      %130 = sbr.rel (0) target = $region53
    $region52: #{prenorm_block.1} parent=1 // pred_region
      %132 = dma.done [#allocation3], 512
    $region53: #{prenorm_block.1} parent=1 // pred_fallthru
      _
    // Predicated region
    $region54: #{prenorm_block.1} parent=1 // pred_check
      _
    $region55: #{prenorm_block.1} parent=1 // pred_check_branch
      %134 = sbr.rel (0) target = $region57
    $region56: #{prenorm_block.1} parent=1 // pred_region
      %136 = dma.done [#allocation6], 3072
    $region57: #{prenorm_block.1} parent=1 // pred_fallthru
      _
    // Predicated region
    $region58: #{prenorm_block.1} parent=1 // pred_check
      _
    $region59: #{prenorm_block.1} parent=1 // pred_check_branch
      %138 = sbr.rel (0) target = $region61
    $region60: #{prenorm_block.1} parent=1 // pred_region
      %140 = dma.done [#allocation6], 1024
    $region61: #{prenorm_block.1} parent=1 // pred_fallthru
      _
    // Predicated region
    $region62: #{prenorm_block.1} parent=1 // pred_check
      _
    $region63: #{prenorm_block.1} parent=1 // pred_check_branch
      %142 = sbr.rel (0) target = $region65
    $region64: #{prenorm_block.1} parent=1 // pred_region
      %144 = dma.done [#allocation9], 2048
    $region65: #{prenorm_block.1} parent=1 // pred_fallthru
      _
    // Predicated region
    $region66: #{prenorm_block.1} parent=1 // pred_check
      _
    $region67: #{prenorm_block.1} parent=1 // pred_check_branch
      %146 = sbr.rel (0) target = $region69
    $region68: #{prenorm_block.1} parent=1 // pred_region
      %148 = dma.done [#allocation9], 32
    $region69: #{prenorm_block.1} parent=1 // pred_fallthru
      _
    // Predicated region
    $region70: #{prenorm_block.1} parent=1 // pred_check
      _
    $region71: #{prenorm_block.1} parent=1 // pred_check_branch
      %150 = sbr.rel (0) target = $region73
    $region72: #{prenorm_block.1} parent=1 // pred_region
      %152 = dma.done [#allocation12], 2048
    $region73: #{prenorm_block.1} parent=1 // pred_fallthru
      _
    // Predicated region
    $region74: #{prenorm_block.1} parent=1 // pred_check
      _
    $region75: #{prenorm_block.1} parent=1 // pred_check_branch
      %154 = sbr.rel (0) target = $region77
    $region76: #{prenorm_block.1} parent=1 // pred_region
      %156 = dma.done [#allocation12], 16
    $region77: #{prenorm_block.1} parent=1 // pred_fallthru
      _
    // Predicated region
    $region78: #{prenorm_block.1} parent=1 // pred_check
      _
    $region79: #{prenorm_block.1} parent=1 // pred_check_branch
      %158 = sbr.rel (0) target = $region81
    $region80: #{prenorm_block.1} parent=1 // pred_region
      %160 = dma.done [#allocation15], 16
    $region81: #{prenorm_block.1} parent=1 // pred_fallthru
      _
    %v162 = vld [vmem:[#allocation2] sm:$0xff]
    %v163 = vld [vmem:[#allocation2 + $0x8] sm:$0xff]
    %v164 = vld [vmem:[#allocation2 + $0x10] sm:$0xff]
    %v165 = vld [vmem:[#allocation2 + $0x18] sm:$0xff]
    %v166 = vld [vmem:[%s8] sm:$0x1]
    %v167 = vld [vmem:[#allocation13] sm:$0x1]
    %168 = vadd.xlane.f32.xlu0 %v162
    %v169 = vpop.xlane.xlu0 %168
    %170 = vadd.xlane.f32.xlu0 %v163
    %v171 = vpop.xlane.xlu0 %170
    %172 = vadd.xlane.f32.xlu0 %v164
    %v173 = vpop.xlane.xlu0 %172
    %174 = vadd.xlane.f32.xlu0 %v165
    %v175 = vpop.xlane.xlu0 %174
    %v176 = vrcp.pop 128.0
    %v177 = vmul.f32 128.0, %v176
    %v178 = vsub.f32 1.0, %v177
    %v179 = vmul.f32 %v176, %v178
    %v180 = vadd.f32 %v176, %v179
    %vm181 = vweird.f32 %v176
    %v182 = vsel %vm181, %v176, %v180
    %v183 = vmul.f32 %v169, %v182
    %v184 = vmul.f32 %v171, %v182
    %v185 = vmul.f32 %v173, %v182
    %v186 = vmul.f32 %v175, %v182
    %v187 = vsub.f32 %v162, %v183
    %v188 = vsub.f32 %v163, %v184
    %v189 = vsub.f32 %v164, %v185
    %v190 = vsub.f32 %v165, %v186
    %v191 = vmul.f32 %v187, %v187
    %v192 = vmul.f32 %v188, %v188
    %v193 = vmul.f32 %v189, %v189
    %v194 = vmul.f32 %v190, %v190
    %195 = vadd.xlane.f32.xlu0 %v191
    %v196 = vpop.xlane.xlu0 %195
    %197 = vadd.xlane.f32.xlu0 %v192
    %v198 = vpop.xlane.xlu0 %197
    %199 = vadd.xlane.f32.xlu0 %v193
    %v200 = vpop.xlane.xlu0 %199
    %201 = vadd.xlane.f32.xlu0 %v194
    %v202 = vpop.xlane.xlu0 %201
    %v203 = vmul.f32 %v196, %v182
    %v204 = vmul.f32 %v198, %v182
    %v205 = vmul.f32 %v200, %v182
    %v206 = vmul.f32 %v202, %v182
    %v207 = vadd.f32 %v203, 1e-05
    %v208 = vadd.f32 %v204, 1e-05
    %v209 = vadd.f32 %v205, 1e-05
    %v210 = vadd.f32 %v206, 1e-05
    %v211 = vrsqrt.pop %v207
    %v212 = vmul.f32 %v211, %v207
    %v213 = vmul.f32 %v212, %v211
    %v214 = vmul.f32 0.5, %v213
    %v215 = vsub.f32 1.5, %v214
    %v216 = vmul.f32 %v211, %v215
    %vm217 = vweird.f32 %v207
    %vm218 = vweird.f32 %v211
    %vm219 = vmor %vm217, %vm218
    %v220 = vsel %vm219, %v211, %v216
    %v221 = vrsqrt.pop %v208
    %v222 = vmul.f32 %v221, %v208
    %v223 = vmul.f32 %v222, %v221
    %v224 = vmul.f32 0.5, %v223
    %v225 = vsub.f32 1.5, %v224
    %v226 = vmul.f32 %v221, %v225
    %vm227 = vweird.f32 %v208
    %vm228 = vweird.f32 %v221
    %vm229 = vmor %vm227, %vm228
    %v230 = vsel %vm229, %v221, %v226
    %v231 = vrsqrt.pop %v209
    %v232 = vmul.f32 %v231, %v209
    %v233 = vmul.f32 %v232, %v231
    %v234 = vmul.f32 0.5, %v233
    %v235 = vsub.f32 1.5, %v234
    %v236 = vmul.f32 %v231, %v235
    %vm237 = vweird.f32 %v209
    %vm238 = vweird.f32 %v231
    %vm239 = vmor %vm237, %vm238
    %v240 = vsel %vm239, %v231, %v236
    %v241 = vrsqrt.pop %v210
    %v242 = vmul.f32 %v241, %v210
    %v243 = vmul.f32 %v242, %v241
    %v244 = vmul.f32 0.5, %v243
    %v245 = vsub.f32 1.5, %v244
    %v246 = vmul.f32 %v241, %v245
    %vm247 = vweird.f32 %v210
    %vm248 = vweird.f32 %v241
    %vm249 = vmor %vm247, %vm248
    %v250 = vsel %vm249, %v241, %v246
    %v251 = vmul.f32 %v187, %v220
    %v252 = vmul.f32 %v188, %v230
    %v253 = vmul.f32 %v189, %v240
    %v254 = vmul.f32 %v190, %v250
    %v256 = vperm.slane %v166, 0
    %v258 = vmul.f32 %v251, %v256
    %v259 = vmul.f32 %v252, %v256
    %v260 = vmul.f32 %v253, %v256
    %v261 = vmul.f32 %v254, %v256
    %v263 = vperm.slane %v167, 0
    %v265 = vadd.f32 %v258, %v263
    %v266 = vadd.f32 %v259, %v263
    %v267 = vadd.f32 %v260, %v263
    %v268 = vadd.f32 %v261, %v263
    %v269 = vpack.c.bf16 %v266, %v265
    %v270 = vpack.c.bf16 %v268, %v267
    %v271 = vld [vmem:[#allocation5] sm:$0xff]
    %v272 = vld [vmem:[#allocation5 + $0x8] sm:$0xf]
    %v273 = vld [vmem:[#allocation5 + $0xc] sm:$0xff]
    %v274 = vld [vmem:[#allocation5 + $0x14] sm:$0xf]
    %v275 = vld [vmem:[#allocation5 + $0x18] sm:$0xff]
    %v276 = vld [vmem:[#allocation5 + $0x20] sm:$0xf]
    %v277 = vld [vmem:[#allocation5 + $0x24] sm:$0xff]
    %v278 = vld [vmem:[#allocation5 + $0x2c] sm:$0xf]
    %v279 = vld [vmem:[#allocation5 + $0x30] sm:$0xff]
    %v280 = vld [vmem:[#allocation5 + $0x38] sm:$0xf]
    %v281 = vld [vmem:[#allocation5 + $0x3c] sm:$0xff]
    %v282 = vld [vmem:[#allocation5 + $0x44] sm:$0xf]
    %v283 = vld [vmem:[#allocation5 + $0x48] sm:$0xff]
    %v284 = vld [vmem:[#allocation5 + $0x50] sm:$0xf]
    %v285 = vld [vmem:[#allocation5 + $0x54] sm:$0xff]
    %v286 = vld [vmem:[#allocation5 + $0x5c] sm:$0xf]
    %v287 = vld [vmem:[#allocation5 + $0x60] sm:$0xff]
    %v288 = vld [vmem:[#allocation5 + $0x68] sm:$0xf]
    %v289 = vld [vmem:[#allocation5 + $0x6c] sm:$0xff]
    %v290 = vld [vmem:[#allocation5 + $0x74] sm:$0xf]
    %v291 = vld [vmem:[#allocation5 + $0x78] sm:$0xff]
    %v292 = vld [vmem:[#allocation5 + $0x80] sm:$0xf]
    %v293 = vld [vmem:[#allocation5 + $0x84] sm:$0xff]
    %v294 = vld [vmem:[#allocation5 + $0x8c] sm:$0xf]
    %v295 = vld [vmem:[#allocation5 + $0x90] sm:$0xff]
    %v296 = vld [vmem:[#allocation5 + $0x98] sm:$0xf]
    %v297 = vld [vmem:[#allocation5 + $0x9c] sm:$0xff]
    %v298 = vld [vmem:[#allocation5 + $0xa4] sm:$0xf]
    %v299 = vld [vmem:[#allocation5 + $0xa8] sm:$0xff]
    %v300 = vld [vmem:[#allocation5 + $0xb0] sm:$0xf]
    %v301 = vld [vmem:[#allocation5 + $0xb4] sm:$0xff]
    %v302 = vld [vmem:[#allocation5 + $0xbc] sm:$0xf]
    %v335 = vunpack.c.l.b16 %v271
    %v336 = vunpack.c.h.b16 %v271
    %v337 = vunpack.c.l.b16 %v272
    %v338 = vunpack.c.l.b16 %v273
    %v339 = vunpack.c.h.b16 %v273
    %v340 = vunpack.c.l.b16 %v274
    %v341 = vunpack.c.l.b16 %v275
    %v342 = vunpack.c.h.b16 %v275
    %v343 = vunpack.c.l.b16 %v276
    %v344 = vunpack.c.l.b16 %v277
    %v345 = vunpack.c.h.b16 %v277
    %v346 = vunpack.c.l.b16 %v278
    %v347 = vunpack.c.l.b16 %v279
    %v348 = vunpack.c.h.b16 %v279
    %v349 = vunpack.c.l.b16 %v280
    %v350 = vunpack.c.l.b16 %v281
    %v351 = vunpack.c.h.b16 %v281
    %v352 = vunpack.c.l.b16 %v282
    %v353 = vunpack.c.l.b16 %v283
    %v354 = vunpack.c.h.b16 %v283
    %v355 = vunpack.c.l.b16 %v284
    %v356 = vunpack.c.l.b16 %v285
    %v357 = vunpack.c.h.b16 %v285
    %v358 = vunpack.c.l.b16 %v286
    %v359 = vunpack.c.l.b16 %v287
    %v360 = vunpack.c.h.b16 %v287
    %v361 = vunpack.c.l.b16 %v288
    %v362 = vunpack.c.l.b16 %v289
    %v363 = vunpack.c.h.b16 %v289
    %v364 = vunpack.c.l.b16 %v290
    %v365 = vunpack.c.l.b16 %v291
    %v366 = vunpack.c.h.b16 %v291
    %v367 = vunpack.c.l.b16 %v292
    %v368 = vunpack.c.l.b16 %v293
    %v369 = vunpack.c.h.b16 %v293
    %v370 = vunpack.c.l.b16 %v294
    %v371 = vunpack.c.l.b16 %v295
    %v372 = vunpack.c.h.b16 %v295
    %v373 = vunpack.c.l.b16 %v296
    %v374 = vunpack.c.l.b16 %v297
    %v375 = vunpack.c.h.b16 %v297
    %v376 = vunpack.c.l.b16 %v298
    %v377 = vunpack.c.l.b16 %v299
    %v378 = vunpack.c.h.b16 %v299
    %v379 = vunpack.c.l.b16 %v300
    %v380 = vunpack.c.l.b16 %v301
    %v381 = vunpack.c.h.b16 %v301
    %v382 = vunpack.c.l.b16 %v302
    %v383 = vpack.c.b16 %v338, %v335
    %v384 = vpack.c.b16 %v339, %v336
    %v385 = vpack.c.b16 %v340, %v337
    %v386 = vpack.c.b16 %v344, %v341
    %v387 = vpack.c.b16 %v345, %v342
    %v388 = vpack.c.b16 %v346, %v343
    %v389 = vpack.c.b16 %v350, %v347
    %v390 = vpack.c.b16 %v351, %v348
    %v391 = vpack.c.b16 %v352, %v349
    %v392 = vpack.c.b16 %v356, %v353
    %v393 = vpack.c.b16 %v357, %v354
    %v394 = vpack.c.b16 %v358, %v355
    %v395 = vpack.c.b16 %v362, %v359
    %v396 = vpack.c.b16 %v363, %v360
    %v397 = vpack.c.b16 %v364, %v361
    %v398 = vpack.c.b16 %v368, %v365
    %v399 = vpack.c.b16 %v369, %v366
    %v400 = vpack.c.b16 %v370, %v367
    %v401 = vpack.c.b16 %v374, %v371
    %v402 = vpack.c.b16 %v375, %v372
    %v403 = vpack.c.b16 %v376, %v373
    %v404 = vpack.c.b16 %v380, %v377
    %v405 = vpack.c.b16 %v381, %v378
    %v406 = vpack.c.b16 %v382, %v379
    %431 = vmatpush.bf16.msra.mxu0 %v404
    %432 = vmatpush.bf16.msra.mxu0 %v401
    %433 = vmatpush.bf16.msra.mxu0 %v398
    %434 = vmatpush.bf16.msra.mxu0 %v395
    %435 = vmatpush.bf16.msra.mxu0 %v392
    %436 = vmatpush.bf16.msra.mxu0 %v389
    %437 = vmatpush.bf16.msra.mxu0 %v386
    %438 = vmatpush.bf16.msra.mxu0 %v383
    %439 = vmatmul.bf16.gmra.mxu0 %v269
    %v440 = vpop.f32.mrf.mxu0
    %v441 = vadd.f32 0.0, %v440
    %v442 = vpop.f32.mrf.mxu0
    %v443 = vadd.f32 0.0, %v442
    %444 = vmatmul.bf16.gmra.mxu0 %v270
    %v445 = vpop.f32.mrf.mxu0
    %v446 = vadd.f32 0.0, %v445
    %v447 = vpop.f32.mrf.mxu0
    %v448 = vadd.f32 0.0, %v447
    %449 = vdwg.mxu0
    %450 = vmatpush.bf16.msra.mxu0 %v405
    %451 = vmatpush.bf16.msra.mxu0 %v402
    %452 = vmatpush.bf16.msra.mxu0 %v399
    %453 = vmatpush.bf16.msra.mxu0 %v396
    %454 = vmatpush.bf16.msra.mxu0 %v393
    %455 = vmatpush.bf16.msra.mxu0 %v390
    %456 = vmatpush.bf16.msra.mxu0 %v387
    %457 = vmatpush.bf16.msra.mxu0 %v384
    %458 = vmatmul.bf16.gmra.mxu0 %v269
    %v459 = vpop.f32.mrf.mxu0
    %v460 = vadd.f32 0.0, %v459
    %v461 = vpop.f32.mrf.mxu0
    %v462 = vadd.f32 0.0, %v461
    %463 = vmatmul.bf16.gmra.mxu0 %v270
    %v464 = vpop.f32.mrf.mxu0
    %v465 = vadd.f32 0.0, %v464
    %v466 = vpop.f32.mrf.mxu0
    %v467 = vadd.f32 0.0, %v466
    %468 = vdwg.mxu0
    %469 = vmatpush.bf16.msra.mxu0 %v406
    %470 = vmatpush.bf16.msra.mxu0 %v403
    %471 = vmatpush.bf16.msra.mxu0 %v400
    %472 = vmatpush.bf16.msra.mxu0 %v397
    %473 = vmatpush.bf16.msra.mxu0 %v394
    %474 = vmatpush.bf16.msra.mxu0 %v391
    %475 = vmatpush.bf16.msra.mxu0 %v388
    %476 = vmatpush.bf16.msra.mxu0 %v385
    %477 = vmatmul.bf16.gmra.mxu0 %v269
    %v478 = vpop.f32.mrf.mxu0
    %v479 = vadd.f32 0.0, %v478
    %v480 = vpop.f32.mrf.mxu0
    %v481 = vadd.f32 0.0, %v480
    %482 = vmatmul.bf16.gmra.mxu0 %v270
    %v483 = vpop.f32.mrf.mxu0
    %v484 = vadd.f32 0.0, %v483
    %v485 = vpop.f32.mrf.mxu0
    %v486 = vadd.f32 0.0, %v485
    %487 = vdwg.mxu0
    %v488 = vlaneseq
    %v489 = vshrl.u32 %v488, 7
    %v490 = vadd.s32 %v489, 8
    %v491 = vadd.s32 %v489, 16
    %v492 = vadd.s32 %v489, 24
    %v493 = vlaneseq
    %v494 = vand.u32 %v493, 127
    %vm495 = vcmp.lt.s32.totalorder %v489, 16
    %vm496 = vcmp.lt.s32.totalorder %v490, 16
    %vm497 = vcmp.lt.s32.totalorder %v491, 16
    %vm498 = vcmp.lt.s32.totalorder %v492, 16
    %vm499 = vcmp.lt.s32.totalorder %v494, 16
    %vm500 = vmand %vm495, %vm499
    %vm501 = vmand %vm496, %vm499
    %vm502 = vmand %vm497, %vm499
    %vm503 = vmand %vm498, %vm499
    %vm504 = vcmp.ge.s32.totalorder %v489, 16
    %vm505 = vcmp.ge.s32.totalorder %v490, 16
    %vm506 = vcmp.ge.s32.totalorder %v491, 16
    %vm507 = vcmp.ge.s32.totalorder %v492, 16
    %vm508 = vcmp.lt.s32.totalorder %v489, 32
    %vm509 = vcmp.lt.s32.totalorder %v490, 32
    %vm510 = vcmp.lt.s32.totalorder %v491, 32
    %vm511 = vcmp.lt.s32.totalorder %v492, 32
    %vm512 = vmand %vm504, %vm508
    %vm513 = vmand %vm505, %vm509
    %vm514 = vmand %vm506, %vm510
    %vm515 = vmand %vm507, %vm511
    %vm516 = vcmp.ge.s32.totalorder %v494, 16
    %vm517 = vmand %vm512, %vm516
    %vm518 = vmand %vm513, %vm516
    %vm519 = vmand %vm514, %vm516
    %vm520 = vmand %vm515, %vm516
    %vm521 = vcmp.lt.s32.totalorder %v494, 32
    %vm522 = vmand %vm517, %vm521
    %vm523 = vmand %vm518, %vm521
    %vm524 = vmand %vm519, %vm521
    %vm525 = vmand %vm520, %vm521
    %vm526 = vmor %vm500, %vm522
    %vm527 = vmor %vm501, %vm523
    %vm528 = vmor %vm502, %vm524
    %vm529 = vmor %vm503, %vm525
    %vm530 = vcmp.le.s32.totalorder %v494, %v489
    %vm531 = vcmp.le.s32.totalorder %v494, %v490
    %vm532 = vcmp.le.s32.totalorder %v494, %v491
    %vm533 = vcmp.le.s32.totalorder %v494, %v492
    %vm534 = vmand %vm526, %vm530
    %vm535 = vmand %vm527, %vm531
    %vm536 = vmand %vm528, %vm532
    %vm537 = vmand %vm529, %vm533
    %v538 = vsel %vm534, 0.0, -1e+30
    %v539 = vsel %vm535, 0.0, -1e+30
    %v540 = vsel %vm536, 0.0, -1e+30
    %v541 = vsel %vm537, 0.0, -1e+30
    %v542 = vpack.c.bf16 %v443, %v441
    %v543 = vpack.c.bf16 %v448, %v446
    %v544 = vpack.c.bf16 %v462, %v460
    %v545 = vpack.c.bf16 %v467, %v465
    %v546 = vpack.c.bf16 %v481, %v479
    %v547 = vpack.c.bf16 %v486, %v484
    %vm548 = vcmask 261120
    %v550 = vsel %vm548, %v542, 0
    %v553 = vsel %vm548, %v543, 0
    %v556 = vsel %vm548, %v544, 0
    %v559 = vsel %vm548, %v545, 0
    %561 = vmatpush.bf16.xpose.msra.mxu0 0
    %562 = vmatpush.bf16.xpose.msra.mxu0 0
    %563 = vmatpush.bf16.xpose.msra.mxu0 0
    %564 = vmatpush.bf16.xpose.msra.mxu0 0
    %565 = vmatpush.bf16.xpose.msra.mxu0 0
    %566 = vmatpush.bf16.xpose.msra.mxu0 0
    %567 = vmatpush.bf16.xpose.msra.mxu0 %v559
    %568 = vmatpush.bf16.xpose.msra.mxu0 %v556
    %569 = vmatmul.bf16.gmra.mxu0 %v550
    %v570 = vpop.f32.mrf.mxu0
    %v571 = vadd.f32 %v538, %v570
    %v572 = vpop.f32.mrf.mxu0
    %v573 = vadd.f32 %v539, %v572
    %574 = vmatmul.bf16.gmra.mxu0 %v553
    %v575 = vpop.f32.mrf.mxu0
    %v576 = vadd.f32 %v540, %v575
    %v577 = vpop.f32.mrf.mxu0
    %v578 = vadd.f32 %v541, %v577
    %579 = vdwg.mxu0
    %v580 = vsel %vm548, %v571, -inf
    %581 = vmax.xlane.f32.xlu0 %v580
    %v582 = vpop.xlane.xlu0 %581
    %v583 = vsel %vm548, %v573, -inf
    %584 = vmax.xlane.f32.xlu0 %v583
    %v585 = vpop.xlane.xlu0 %584
    %v586 = vsel %vm548, %v576, -inf
    %587 = vmax.xlane.f32.xlu0 %v586
    %v588 = vpop.xlane.xlu0 %587
    %v589 = vsel %vm548, %v578, -inf
    %590 = vmax.xlane.f32.xlu0 %v589
    %v591 = vpop.xlane.xlu0 %590
    %v592 = vsub.f32 %v571, %v582
    %v593 = vsub.f32 %v573, %v585
    %v594 = vsub.f32 %v576, %v588
    %v595 = vsub.f32 %v578, %v591
    %v596 = vmul.f32 %v592, 1.442695
    %v597 = vpow.pop %v596
    %v598 = vmul.f32 %v593, 1.442695
    %v599 = vpow.pop %v598
    %v600 = vmul.f32 %v594, 1.442695
    %v601 = vpow.pop %v600
    %v602 = vmul.f32 %v595, 1.442695
    %v603 = vpow.pop %v602
    %v604 = vsel %vm548, %v597, 0.0
    %605 = vadd.xlane.f32.xlu0 %v604
    %v606 = vpop.xlane.xlu0 %605
    %v607 = vsel %vm548, %v599, 0.0
    %608 = vadd.xlane.f32.xlu0 %v607
    %v609 = vpop.xlane.xlu0 %608
    %v610 = vsel %vm548, %v601, 0.0
    %611 = vadd.xlane.f32.xlu0 %v610
    %v612 = vpop.xlane.xlu0 %611
    %v613 = vsel %vm548, %v603, 0.0
    %614 = vadd.xlane.f32.xlu0 %v613
    %v615 = vpop.xlane.xlu0 %614
    %v616 = vrcp.pop %v606
    %v617 = vrcp.pop %v609
    %v618 = vrcp.pop %v612
    %v619 = vrcp.pop %v615
    %v620 = vmul.f32 %v597, %v616
    %v621 = vmul.f32 %v599, %v617
    %v622 = vmul.f32 %v601, %v618
    %v623 = vmul.f32 %v603, %v619
    %v624 = vpack.c.bf16 %v621, %v620
    %v625 = vpack.c.bf16 %v623, %v622
    %v627 = vsel %vm548, %v624, 0
    %v630 = vsel %vm548, %v625, 0
    %632 = vmatpush.bf16.msra.mxu0 0
    %633 = vmatpush.bf16.msra.mxu0 0
    %634 = vmatpush.bf16.msra.mxu0 0
    %635 = vmatpush.bf16.msra.mxu0 0
    %636 = vmatpush.bf16.msra.mxu0 0
    %637 = vmatpush.bf16.msra.mxu0 0
    %638 = vmatpush.bf16.msra.mxu0 %v547
    %639 = vmatpush.bf16.msra.mxu0 %v546
    %640 = vmatmul.bf16.gmra.mxu0 %v627
    %v641 = vpop.f32.mrf.mxu0
    %v642 = vadd.f32 0.0, %v641
    %v643 = vpop.f32.mrf.mxu0
    %v644 = vadd.f32 0.0, %v643
    %645 = vmatmul.bf16.gmra.mxu0 %v630
    %v646 = vpop.f32.mrf.mxu0
    %v647 = vadd.f32 0.0, %v646
    %v648 = vpop.f32.mrf.mxu0
    %v649 = vadd.f32 0.0, %v648
    %650 = vdwg.mxu0
    %v651 = vpack.c.bf16 %v644, %v642
    %v652 = vpack.c.bf16 %v649, %v647
    %v653 = vld [vmem:[#allocation7] sm:$0xf]
    %v654 = vld [vmem:[#allocation7 + $0x4] sm:$0xf]
    %v655 = vld [vmem:[#allocation7 + $0x8] sm:$0xf]
    %v656 = vld [vmem:[#allocation7 + $0xc] sm:$0xf]
    %659 = vrot.lane.b32.xlu0 %v542, 96
    %v660 = vpop.permute.xlu0 %659
    %661 = vrot.lane.b32.xlu0 %v543, 96
    %v662 = vpop.permute.xlu0 %661
    %665 = vrot.lane.b32.xlu0 %v544, 96
    %v666 = vpop.permute.xlu0 %665
    %667 = vrot.lane.b32.xlu0 %v545, 96
    %v668 = vpop.permute.xlu0 %667
    %v670 = vsel %vm548, %v660, 0
    %v673 = vsel %vm548, %v662, 0
    %v676 = vsel %vm548, %v666, 0
    %v679 = vsel %vm548, %v668, 0
    %681 = vmatpush.bf16.xpose.msra.mxu0 0
    %682 = vmatpush.bf16.xpose.msra.mxu0 0
    %683 = vmatpush.bf16.xpose.msra.mxu0 0
    %684 = vmatpush.bf16.xpose.msra.mxu0 0
    %685 = vmatpush.bf16.xpose.msra.mxu0 0
    %686 = vmatpush.bf16.xpose.msra.mxu0 0
    %687 = vmatpush.bf16.xpose.msra.mxu0 %v679
    %688 = vmatpush.bf16.xpose.msra.mxu0 %v676
    %689 = vmatmul.bf16.gmra.mxu0 %v670
    %v690 = vpop.f32.mrf.mxu0
    %v691 = vadd.f32 %v538, %v690
    %v692 = vpop.f32.mrf.mxu0
    %v693 = vadd.f32 %v539, %v692
    %694 = vmatmul.bf16.gmra.mxu0 %v673
    %v695 = vpop.f32.mrf.mxu0
    %v696 = vadd.f32 %v540, %v695
    %v697 = vpop.f32.mrf.mxu0
    %v698 = vadd.f32 %v541, %v697
    %699 = vdwg.mxu0
    %v700 = vsel %vm548, %v691, -inf
    %701 = vmax.xlane.f32.xlu0 %v700
    %v702 = vpop.xlane.xlu0 %701
    %v703 = vsel %vm548, %v693, -inf
    %704 = vmax.xlane.f32.xlu0 %v703
    %v705 = vpop.xlane.xlu0 %704
    %v706 = vsel %vm548, %v696, -inf
    %707 = vmax.xlane.f32.xlu0 %v706
    %v708 = vpop.xlane.xlu0 %707
    %v709 = vsel %vm548, %v698, -inf
    %710 = vmax.xlane.f32.xlu0 %v709
    %v711 = vpop.xlane.xlu0 %710
    %v712 = vsub.f32 %v691, %v702
    %v713 = vsub.f32 %v693, %v705
    %v714 = vsub.f32 %v696, %v708
    %v715 = vsub.f32 %v698, %v711
    %v716 = vmul.f32 %v712, 1.442695
    %v717 = vpow.pop %v716
    %v718 = vmul.f32 %v713, 1.442695
    %v719 = vpow.pop %v718
    %v720 = vmul.f32 %v714, 1.442695
    %v721 = vpow.pop %v720
    %v722 = vmul.f32 %v715, 1.442695
    %v723 = vpow.pop %v722
    %v724 = vsel %vm548, %v717, 0.0
    %725 = vadd.xlane.f32.xlu0 %v724
    %v726 = vpop.xlane.xlu0 %725
    %v727 = vsel %vm548, %v719, 0.0
    %728 = vadd.xlane.f32.xlu0 %v727
    %v729 = vpop.xlane.xlu0 %728
    %v730 = vsel %vm548, %v721, 0.0
    %731 = vadd.xlane.f32.xlu0 %v730
    %v732 = vpop.xlane.xlu0 %731
    %v733 = vsel %vm548, %v723, 0.0
    %734 = vadd.xlane.f32.xlu0 %v733
    %v735 = vpop.xlane.xlu0 %734
    %v736 = vrcp.pop %v726
    %v737 = vrcp.pop %v729
    %v738 = vrcp.pop %v732
    %v739 = vrcp.pop %v735
    %v740 = vmul.f32 %v717, %v736
    %v741 = vmul.f32 %v719, %v737
    %v742 = vmul.f32 %v721, %v738
    %v743 = vmul.f32 %v723, %v739
    %v744 = vpack.c.bf16 %v741, %v740
    %v745 = vpack.c.bf16 %v743, %v742
    %748 = vrot.lane.b32.xlu0 %v546, 96
    %v749 = vpop.permute.xlu0 %748
    %750 = vrot.lane.b32.xlu0 %v547, 96
    %v751 = vpop.permute.xlu0 %750
    %v755 = vsel %vm548, %v744, 0
    %v758 = vsel %vm548, %v745, 0
    %760 = vmatpush.bf16.msra.mxu0 0
    %761 = vmatpush.bf16.msra.mxu0 0
    %762 = vmatpush.bf16.msra.mxu0 0
    %763 = vmatpush.bf16.msra.mxu0 0
    %764 = vmatpush.bf16.msra.mxu0 0
    %765 = vmatpush.bf16.msra.mxu0 0
    %766 = vmatpush.bf16.msra.mxu0 %v751
    %767 = vmatpush.bf16.msra.mxu0 %v749
    %768 = vmatmul.bf16.gmra.mxu0 %v755
    %v769 = vpop.f32.mrf.mxu0
    %v770 = vadd.f32 0.0, %v769
    %v771 = vpop.f32.mrf.mxu0
    %v772 = vadd.f32 0.0, %v771
    %773 = vmatmul.bf16.gmra.mxu0 %v758
    %v774 = vpop.f32.mrf.mxu0
    %v775 = vadd.f32 0.0, %v774
    %v776 = vpop.f32.mrf.mxu0
    %v777 = vadd.f32 0.0, %v776
    %778 = vdwg.mxu0
    %v779 = vpack.c.bf16 %v772, %v770
    %v780 = vpack.c.bf16 %v777, %v775
    %s781 = scalar_lea.vmem [#allocation7], 16
    %v782 = vld [vmem:[%s781] sm:$0xf]
    %v783 = vld [vmem:[%s781 + $0x4] sm:$0xf]
    %v784 = vld [vmem:[%s781 + $0x8] sm:$0xf]
    %v785 = vld [vmem:[%s781 + $0xc] sm:$0xf]
    %v790 = vunpack.c.l.b16 %v782
    %v791 = vunpack.c.l.b16 %v783
    %v792 = vunpack.c.l.b16 %v784
    %v793 = vunpack.c.l.b16 %v785
    %v794 = vpack.c.b16 %v791, %v790
    %v795 = vpack.c.b16 %v793, %v792
    %v799 = vsel %vm548, %v779, 0
    %v802 = vsel %vm548, %v780, 0
    %804 = vmatpush.bf16.msra.mxu0 0
    %805 = vmatpush.bf16.msra.mxu0 0
    %806 = vmatpush.bf16.msra.mxu0 0
    %807 = vmatpush.bf16.msra.mxu0 0
    %808 = vmatpush.bf16.msra.mxu0 0
    %809 = vmatpush.bf16.msra.mxu0 0
    %810 = vmatpush.bf16.msra.mxu0 %v795
    %811 = vmatpush.bf16.msra.mxu0 %v794
    %812 = vmatmul.bf16.gmra.mxu0 %v799
    %v813 = vpop.f32.mrf.mxu0
    %v814 = vadd.f32 0.0, %v813
    %v815 = vpop.f32.mrf.mxu0
    %v816 = vadd.f32 0.0, %v815
    %817 = vmatmul.bf16.gmra.mxu0 %v802
    %v818 = vpop.f32.mrf.mxu0
    %v819 = vadd.f32 0.0, %v818
    %v820 = vpop.f32.mrf.mxu0
    %v821 = vadd.f32 0.0, %v820
    %822 = vdwg.mxu0
    %v827 = vunpack.c.l.b16 %v653
    %v828 = vunpack.c.l.b16 %v654
    %v829 = vunpack.c.l.b16 %v655
    %v830 = vunpack.c.l.b16 %v656
    %v831 = vpack.c.b16 %v828, %v827
    %v832 = vpack.c.b16 %v830, %v829
    %v836 = vsel %vm548, %v651, 0
    %v839 = vsel %vm548, %v652, 0
    %841 = vmatpush.bf16.msra.mxu0 0
    %842 = vmatpush.bf16.msra.mxu0 0
    %843 = vmatpush.bf16.msra.mxu0 0
    %844 = vmatpush.bf16.msra.mxu0 0
    %845 = vmatpush.bf16.msra.mxu0 0
    %846 = vmatpush.bf16.msra.mxu0 0
    %847 = vmatpush.bf16.msra.mxu0 %v832
    %848 = vmatpush.bf16.msra.mxu0 %v831
    %849 = vmatmul.bf16.gmra.mxu0 %v836
    %v850 = vpop.f32.mrf.mxu0
    %v851 = vadd.f32 %v814, %v850
    %v852 = vpop.f32.mrf.mxu0
    %v853 = vadd.f32 %v816, %v852
    %854 = vmatmul.bf16.gmra.mxu0 %v839
    %v855 = vpop.f32.mrf.mxu0
    %v856 = vadd.f32 %v819, %v855
    %v857 = vpop.f32.mrf.mxu0
    %v858 = vadd.f32 %v821, %v857
    %859 = vdwg.mxu0
    %860 = vrot.lane.b32.xlu0 %v542, 64
    %v861 = vpop.permute.xlu0 %860
    %862 = vrot.lane.b32.xlu0 %v543, 64
    %v863 = vpop.permute.xlu0 %862
    %864 = vrot.lane.b32.xlu0 %v544, 64
    %v865 = vpop.permute.xlu0 %864
    %866 = vrot.lane.b32.xlu0 %v545, 64
    %v867 = vpop.permute.xlu0 %866
    %v869 = vsel %vm548, %v861, 0
    %v872 = vsel %vm548, %v863, 0
    %v875 = vsel %vm548, %v865, 0
    %v878 = vsel %vm548, %v867, 0
    %880 = vmatpush.bf16.xpose.msra.mxu0 0
    %881 = vmatpush.bf16.xpose.msra.mxu0 0
    %882 = vmatpush.bf16.xpose.msra.mxu0 0
    %883 = vmatpush.bf16.xpose.msra.mxu0 0
    %884 = vmatpush.bf16.xpose.msra.mxu0 0
    %885 = vmatpush.bf16.xpose.msra.mxu0 0
    %886 = vmatpush.bf16.xpose.msra.mxu0 %v878
    %887 = vmatpush.bf16.xpose.msra.mxu0 %v875
    %888 = vmatmul.bf16.gmra.mxu0 %v869
    %v889 = vpop.f32.mrf.mxu0
    %v890 = vadd.f32 %v538, %v889
    %v891 = vpop.f32.mrf.mxu0
    %v892 = vadd.f32 %v539, %v891
    %893 = vmatmul.bf16.gmra.mxu0 %v872
    %v894 = vpop.f32.mrf.mxu0
    %v895 = vadd.f32 %v540, %v894
    %v896 = vpop.f32.mrf.mxu0
    %v897 = vadd.f32 %v541, %v896
    %898 = vdwg.mxu0
    %v899 = vsel %vm548, %v890, -inf
    %900 = vmax.xlane.f32.xlu0 %v899
    %v901 = vpop.xlane.xlu0 %900
    %v902 = vsel %vm548, %v892, -inf
    %903 = vmax.xlane.f32.xlu0 %v902
    %v904 = vpop.xlane.xlu0 %903
    %v905 = vsel %vm548, %v895, -inf
    %906 = vmax.xlane.f32.xlu0 %v905
    %v907 = vpop.xlane.xlu0 %906
    %v908 = vsel %vm548, %v897, -inf
    %909 = vmax.xlane.f32.xlu0 %v908
    %v910 = vpop.xlane.xlu0 %909
    %v911 = vsub.f32 %v890, %v901
    %v912 = vsub.f32 %v892, %v904
    %v913 = vsub.f32 %v895, %v907
    %v914 = vsub.f32 %v897, %v910
    %v915 = vmul.f32 %v911, 1.442695
    %v916 = vpow.pop %v915
    %v917 = vmul.f32 %v912, 1.442695
    %v918 = vpow.pop %v917
    %v919 = vmul.f32 %v913, 1.442695
    %v920 = vpow.pop %v919
    %v921 = vmul.f32 %v914, 1.442695
    %v922 = vpow.pop %v921
    %v923 = vsel %vm548, %v916, 0.0
    %924 = vadd.xlane.f32.xlu0 %v923
    %v925 = vpop.xlane.xlu0 %924
    %v926 = vsel %vm548, %v918, 0.0
    %927 = vadd.xlane.f32.xlu0 %v926
    %v928 = vpop.xlane.xlu0 %927
    %v929 = vsel %vm548, %v920, 0.0
    %930 = vadd.xlane.f32.xlu0 %v929
    %v931 = vpop.xlane.xlu0 %930
    %v932 = vsel %vm548, %v922, 0.0
    %933 = vadd.xlane.f32.xlu0 %v932
    %v934 = vpop.xlane.xlu0 %933
    %v935 = vrcp.pop %v925
    %v936 = vrcp.pop %v928
    %v937 = vrcp.pop %v931
    %v938 = vrcp.pop %v934
    %v939 = vmul.f32 %v916, %v935
    %v940 = vmul.f32 %v918, %v936
    %v941 = vmul.f32 %v920, %v937
    %v942 = vmul.f32 %v922, %v938
    %v943 = vpack.c.bf16 %v940, %v939
    %v944 = vpack.c.bf16 %v942, %v941
    %945 = vrot.lane.b32.xlu0 %v546, 64
    %v946 = vpop.permute.xlu0 %945
    %947 = vrot.lane.b32.xlu0 %v547, 64
    %v948 = vpop.permute.xlu0 %947
    %v952 = vsel %vm548, %v943, 0
    %v955 = vsel %vm548, %v944, 0
    %957 = vmatpush.bf16.msra.mxu0 0
    %958 = vmatpush.bf16.msra.mxu0 0
    %959 = vmatpush.bf16.msra.mxu0 0
    %960 = vmatpush.bf16.msra.mxu0 0
    %961 = vmatpush.bf16.msra.mxu0 0
    %962 = vmatpush.bf16.msra.mxu0 0
    %963 = vmatpush.bf16.msra.mxu0 %v948
    %964 = vmatpush.bf16.msra.mxu0 %v946
    %965 = vmatmul.bf16.gmra.mxu0 %v952
    %v966 = vpop.f32.mrf.mxu0
    %v967 = vadd.f32 0.0, %v966
    %v968 = vpop.f32.mrf.mxu0
    %v969 = vadd.f32 0.0, %v968
    %970 = vmatmul.bf16.gmra.mxu0 %v955
    %v971 = vpop.f32.mrf.mxu0
    %v972 = vadd.f32 0.0, %v971
    %v973 = vpop.f32.mrf.mxu0
    %v974 = vadd.f32 0.0, %v973
    %975 = vdwg.mxu0
    %v976 = vpack.c.bf16 %v969, %v967
    %v977 = vpack.c.bf16 %v974, %v972
    %s978 = scalar_lea.vmem [#allocation7], 32
    %v979 = vld [vmem:[%s978] sm:$0xf]
    %v980 = vld [vmem:[%s978 + $0x4] sm:$0xf]
    %v981 = vld [vmem:[%s978 + $0x8] sm:$0xf]
    %v982 = vld [vmem:[%s978 + $0xc] sm:$0xf]
    %v987 = vunpack.c.l.b16 %v979
    %v988 = vunpack.c.l.b16 %v980
    %v989 = vunpack.c.l.b16 %v981
    %v990 = vunpack.c.l.b16 %v982
    %v991 = vpack.c.b16 %v988, %v987
    %v992 = vpack.c.b16 %v990, %v989
    %v996 = vsel %vm548, %v976, 0
    %v999 = vsel %vm548, %v977, 0
    %1001 = vmatpush.bf16.msra.mxu0 0
    %1002 = vmatpush.bf16.msra.mxu0 0
    %1003 = vmatpush.bf16.msra.mxu0 0
    %1004 = vmatpush.bf16.msra.mxu0 0
    %1005 = vmatpush.bf16.msra.mxu0 0
    %1006 = vmatpush.bf16.msra.mxu0 0
    %1007 = vmatpush.bf16.msra.mxu0 %v992
    %1008 = vmatpush.bf16.msra.mxu0 %v991
    %1009 = vmatmul.bf16.gmra.mxu0 %v996
    %v1010 = vpop.f32.mrf.mxu0
    %v1011 = vadd.f32 0.0, %v1010
    %v1012 = vpop.f32.mrf.mxu0
    %v1013 = vadd.f32 0.0, %v1012
    %1014 = vmatmul.bf16.gmra.mxu0 %v999
    %v1015 = vpop.f32.mrf.mxu0
    %v1016 = vadd.f32 0.0, %v1015
    %v1017 = vpop.f32.mrf.mxu0
    %v1018 = vadd.f32 0.0, %v1017
    %1019 = vdwg.mxu0
    %v1020 = vadd.f32 %v851, %v1011
    %v1021 = vadd.f32 %v853, %v1013
    %v1022 = vadd.f32 %v856, %v1016
    %v1023 = vadd.f32 %v858, %v1018
    %1024 = vrot.lane.b32.xlu0 %v542, 32
    %v1025 = vpop.permute.xlu0 %1024
    %1026 = vrot.lane.b32.xlu0 %v543, 32
    %v1027 = vpop.permute.xlu0 %1026
    %1028 = vrot.lane.b32.xlu0 %v544, 32
    %v1029 = vpop.permute.xlu0 %1028
    %1030 = vrot.lane.b32.xlu0 %v545, 32
    %v1031 = vpop.permute.xlu0 %1030
    %v1033 = vsel %vm548, %v1025, 0
    %v1036 = vsel %vm548, %v1027, 0
    %v1039 = vsel %vm548, %v1029, 0
    %v1042 = vsel %vm548, %v1031, 0
    %1044 = vmatpush.bf16.xpose.msra.mxu0 0
    %1045 = vmatpush.bf16.xpose.msra.mxu0 0
    %1046 = vmatpush.bf16.xpose.msra.mxu0 0
    %1047 = vmatpush.bf16.xpose.msra.mxu0 0
    %1048 = vmatpush.bf16.xpose.msra.mxu0 0
    %1049 = vmatpush.bf16.xpose.msra.mxu0 0
    %1050 = vmatpush.bf16.xpose.msra.mxu0 %v1042
    %1051 = vmatpush.bf16.xpose.msra.mxu0 %v1039
    %1052 = vmatmul.bf16.gmra.mxu0 %v1033
    %v1053 = vpop.f32.mrf.mxu0
    %v1054 = vadd.f32 %v538, %v1053
    %v1055 = vpop.f32.mrf.mxu0
    %v1056 = vadd.f32 %v539, %v1055
    %1057 = vmatmul.bf16.gmra.mxu0 %v1036
    %v1058 = vpop.f32.mrf.mxu0
    %v1059 = vadd.f32 %v540, %v1058
    %v1060 = vpop.f32.mrf.mxu0
    %v1061 = vadd.f32 %v541, %v1060
    %1062 = vdwg.mxu0
    %v1063 = vsel %vm548, %v1054, -inf
    %1064 = vmax.xlane.f32.xlu0 %v1063
    %v1065 = vpop.xlane.xlu0 %1064
    %v1066 = vsel %vm548, %v1056, -inf
    %1067 = vmax.xlane.f32.xlu0 %v1066
    %v1068 = vpop.xlane.xlu0 %1067
    %v1069 = vsel %vm548, %v1059, -inf
    %1070 = vmax.xlane.f32.xlu0 %v1069
    %v1071 = vpop.xlane.xlu0 %1070
    %v1072 = vsel %vm548, %v1061, -inf
    %1073 = vmax.xlane.f32.xlu0 %v1072
    %v1074 = vpop.xlane.xlu0 %1073
    %v1075 = vsub.f32 %v1054, %v1065
    %v1076 = vsub.f32 %v1056, %v1068
    %v1077 = vsub.f32 %v1059, %v1071
    %v1078 = vsub.f32 %v1061, %v1074
    %v1079 = vmul.f32 %v1075, 1.442695
    %v1080 = vpow.pop %v1079
    %v1081 = vmul.f32 %v1076, 1.442695
    %v1082 = vpow.pop %v1081
    %v1083 = vmul.f32 %v1077, 1.442695
    %v1084 = vpow.pop %v1083
    %v1085 = vmul.f32 %v1078, 1.442695
    %v1086 = vpow.pop %v1085
    %v1087 = vsel %vm548, %v1080, 0.0
    %1088 = vadd.xlane.f32.xlu0 %v1087
    %v1089 = vpop.xlane.xlu0 %1088
    %v1090 = vsel %vm548, %v1082, 0.0
    %1091 = vadd.xlane.f32.xlu0 %v1090
    %v1092 = vpop.xlane.xlu0 %1091
    %v1093 = vsel %vm548, %v1084, 0.0
    %1094 = vadd.xlane.f32.xlu0 %v1093
    %v1095 = vpop.xlane.xlu0 %1094
    %v1096 = vsel %vm548, %v1086, 0.0
    %1097 = vadd.xlane.f32.xlu0 %v1096
    %v1098 = vpop.xlane.xlu0 %1097
    %v1099 = vrcp.pop %v1089
    %v1100 = vrcp.pop %v1092
    %v1101 = vrcp.pop %v1095
    %v1102 = vrcp.pop %v1098
    %v1103 = vmul.f32 %v1080, %v1099
    %v1104 = vmul.f32 %v1082, %v1100
    %v1105 = vmul.f32 %v1084, %v1101
    %v1106 = vmul.f32 %v1086, %v1102
    %v1107 = vpack.c.bf16 %v1104, %v1103
    %v1108 = vpack.c.bf16 %v1106, %v1105
    %1109 = vrot.lane.b32.xlu0 %v546, 32
    %v1110 = vpop.permute.xlu0 %1109
    %1111 = vrot.lane.b32.xlu0 %v547, 32
    %v1112 = vpop.permute.xlu0 %1111
    %v1116 = vsel %vm548, %v1107, 0
    %v1119 = vsel %vm548, %v1108, 0
    %1121 = vmatpush.bf16.msra.mxu0 0
    %1122 = vmatpush.bf16.msra.mxu0 0
    %1123 = vmatpush.bf16.msra.mxu0 0
    %1124 = vmatpush.bf16.msra.mxu0 0
    %1125 = vmatpush.bf16.msra.mxu0 0
    %1126 = vmatpush.bf16.msra.mxu0 0
    %1127 = vmatpush.bf16.msra.mxu0 %v1112
    %1128 = vmatpush.bf16.msra.mxu0 %v1110
    %1129 = vmatmul.bf16.gmra.mxu0 %v1116
    %v1130 = vpop.f32.mrf.mxu0
    %v1131 = vadd.f32 0.0, %v1130
    %v1132 = vpop.f32.mrf.mxu0
    %v1133 = vadd.f32 0.0, %v1132
    %1134 = vmatmul.bf16.gmra.mxu0 %v1119
    %v1135 = vpop.f32.mrf.mxu0
    %v1136 = vadd.f32 0.0, %v1135
    %v1137 = vpop.f32.mrf.mxu0
    %v1138 = vadd.f32 0.0, %v1137
    %1139 = vdwg.mxu0
    %v1140 = vpack.c.bf16 %v1133, %v1131
    %v1141 = vpack.c.bf16 %v1138, %v1136
    %s1142 = scalar_lea.vmem [#allocation7], 48
    %v1143 = vld [vmem:[%s1142] sm:$0xf]
    %v1144 = vld [vmem:[%s1142 + $0x4] sm:$0xf]
    %v1145 = vld [vmem:[%s1142 + $0x8] sm:$0xf]
    %v1146 = vld [vmem:[%s1142 + $0xc] sm:$0xf]
    %v1151 = vunpack.c.l.b16 %v1143
    %v1152 = vunpack.c.l.b16 %v1144
    %v1153 = vunpack.c.l.b16 %v1145
    %v1154 = vunpack.c.l.b16 %v1146
    %v1155 = vpack.c.b16 %v1152, %v1151
    %v1156 = vpack.c.b16 %v1154, %v1153
    %v1160 = vsel %vm548, %v1140, 0
    %v1163 = vsel %vm548, %v1141, 0
    %1165 = vmatpush.bf16.msra.mxu0 0
    %1166 = vmatpush.bf16.msra.mxu0 0
    %1167 = vmatpush.bf16.msra.mxu0 0
    %1168 = vmatpush.bf16.msra.mxu0 0
    %1169 = vmatpush.bf16.msra.mxu0 0
    %1170 = vmatpush.bf16.msra.mxu0 0
    %1171 = vmatpush.bf16.msra.mxu0 %v1156
    %1172 = vmatpush.bf16.msra.mxu0 %v1155
    %1173 = vmatmul.bf16.gmra.mxu0 %v1160
    %v1174 = vpop.f32.mrf.mxu0
    %v1175 = vadd.f32 0.0, %v1174
    %v1176 = vpop.f32.mrf.mxu0
    %v1177 = vadd.f32 0.0, %v1176
    %1178 = vmatmul.bf16.gmra.mxu0 %v1163
    %v1179 = vpop.f32.mrf.mxu0
    %v1180 = vadd.f32 0.0, %v1179
    %v1181 = vpop.f32.mrf.mxu0
    %v1182 = vadd.f32 0.0, %v1181
    %1183 = vdwg.mxu0
    %v1184 = vadd.f32 %v1020, %v1175
    %v1185 = vadd.f32 %v1021, %v1177
    %v1186 = vadd.f32 %v1022, %v1180
    %v1187 = vadd.f32 %v1023, %v1182
    %v1188 = vld [vmem:[%s3] sm:$0x1]
    %v1190 = vperm.slane %v1188, 0
    %v1192 = vadd.f32 %v1184, %v1190
    %v1193 = vadd.f32 %v1185, %v1190
    %v1194 = vadd.f32 %v1186, %v1190
    %v1195 = vadd.f32 %v1187, %v1190
    %v1196 = vadd.f32 %v162, %v1192
    %v1197 = vadd.f32 %v163, %v1193
    %v1198 = vadd.f32 %v164, %v1194
    %v1199 = vadd.f32 %v165, %v1195
    %v1200 = vld [vmem:[%s10] sm:$0x1]
    %v1201 = vld [vmem:[#allocation14] sm:$0x1]
    %1202 = vadd.xlane.f32.xlu0 %v1196
    %v1203 = vpop.xlane.xlu0 %1202
    %1204 = vadd.xlane.f32.xlu0 %v1197
    %v1205 = vpop.xlane.xlu0 %1204
    %1206 = vadd.xlane.f32.xlu0 %v1198
    %v1207 = vpop.xlane.xlu0 %1206
    %1208 = vadd.xlane.f32.xlu0 %v1199
    %v1209 = vpop.xlane.xlu0 %1208
    %v1210 = vmul.f32 %v1203, %v182
    %v1211 = vmul.f32 %v1205, %v182
    %v1212 = vmul.f32 %v1207, %v182
    %v1213 = vmul.f32 %v1209, %v182
    %v1214 = vsub.f32 %v1196, %v1210
    %v1215 = vsub.f32 %v1197, %v1211
    %v1216 = vsub.f32 %v1198, %v1212
    %v1217 = vsub.f32 %v1199, %v1213
    %v1218 = vmul.f32 %v1214, %v1214
    %v1219 = vmul.f32 %v1215, %v1215
    %v1220 = vmul.f32 %v1216, %v1216
    %v1221 = vmul.f32 %v1217, %v1217
    %1222 = vadd.xlane.f32.xlu0 %v1218
    %v1223 = vpop.xlane.xlu0 %1222
    %1224 = vadd.xlane.f32.xlu0 %v1219
    %v1225 = vpop.xlane.xlu0 %1224
    %1226 = vadd.xlane.f32.xlu0 %v1220
    %v1227 = vpop.xlane.xlu0 %1226
    %1228 = vadd.xlane.f32.xlu0 %v1221
    %v1229 = vpop.xlane.xlu0 %1228
    %v1230 = vmul.f32 %v1223, %v182
    %v1231 = vmul.f32 %v1225, %v182
    %v1232 = vmul.f32 %v1227, %v182
    %v1233 = vmul.f32 %v1229, %v182
    %v1234 = vadd.f32 %v1230, 1e-05
    %v1235 = vadd.f32 %v1231, 1e-05
    %v1236 = vadd.f32 %v1232, 1e-05
    %v1237 = vadd.f32 %v1233, 1e-05
    %v1238 = vrsqrt.pop %v1234
    %v1239 = vmul.f32 %v1238, %v1234
    %v1240 = vmul.f32 %v1239, %v1238
    %v1241 = vmul.f32 0.5, %v1240
    %v1242 = vsub.f32 1.5, %v1241
    %v1243 = vmul.f32 %v1238, %v1242
    %vm1244 = vweird.f32 %v1234
    %vm1245 = vweird.f32 %v1238
    %vm1246 = vmor %vm1244, %vm1245
    %v1247 = vsel %vm1246, %v1238, %v1243
    %v1248 = vrsqrt.pop %v1235
    %v1249 = vmul.f32 %v1248, %v1235
    %v1250 = vmul.f32 %v1249, %v1248
    %v1251 = vmul.f32 0.5, %v1250
    %v1252 = vsub.f32 1.5, %v1251
    %v1253 = vmul.f32 %v1248, %v1252
    %vm1254 = vweird.f32 %v1235
    %vm1255 = vweird.f32 %v1248
    %vm1256 = vmor %vm1254, %vm1255
    %v1257 = vsel %vm1256, %v1248, %v1253
    %v1258 = vrsqrt.pop %v1236
    %v1259 = vmul.f32 %v1258, %v1236
    %v1260 = vmul.f32 %v1259, %v1258
    %v1261 = vmul.f32 0.5, %v1260
    %v1262 = vsub.f32 1.5, %v1261
    %v1263 = vmul.f32 %v1258, %v1262
    %vm1264 = vweird.f32 %v1236
    %vm1265 = vweird.f32 %v1258
    %vm1266 = vmor %vm1264, %vm1265
    %v1267 = vsel %vm1266, %v1258, %v1263
    %v1268 = vrsqrt.pop %v1237
    %v1269 = vmul.f32 %v1268, %v1237
    %v1270 = vmul.f32 %v1269, %v1268
    %v1271 = vmul.f32 0.5, %v1270
    %v1272 = vsub.f32 1.5, %v1271
    %v1273 = vmul.f32 %v1268, %v1272
    %vm1274 = vweird.f32 %v1237
    %vm1275 = vweird.f32 %v1268
    %vm1276 = vmor %vm1274, %vm1275
    %v1277 = vsel %vm1276, %v1268, %v1273
    %v1278 = vmul.f32 %v1214, %v1247
    %v1279 = vmul.f32 %v1215, %v1257
    %v1280 = vmul.f32 %v1216, %v1267
    %v1281 = vmul.f32 %v1217, %v1277
    %v1283 = vperm.slane %v1200, 0
    %v1285 = vmul.f32 %v1278, %v1283
    %v1286 = vmul.f32 %v1279, %v1283
    %v1287 = vmul.f32 %v1280, %v1283
    %v1288 = vmul.f32 %v1281, %v1283
    %v1290 = vperm.slane %v1201, 0
    %v1292 = vadd.f32 %v1285, %v1290
    %v1293 = vadd.f32 %v1286, %v1290
    %v1294 = vadd.f32 %v1287, %v1290
    %v1295 = vadd.f32 %v1288, %v1290
    %v1296 = vpack.c.bf16 %v1293, %v1292
    %v1297 = vpack.c.bf16 %v1295, %v1294
    %v1298 = vld [vmem:[#allocation8] sm:$0xff]
    %v1299 = vld [vmem:[#allocation8 + $0x8] sm:$0xff]
    %v1300 = vld [vmem:[#allocation8 + $0x10] sm:$0xff]
    %v1301 = vld [vmem:[#allocation8 + $0x18] sm:$0xff]
    %v1302 = vld [vmem:[#allocation8 + $0x20] sm:$0xff]
    %v1303 = vld [vmem:[#allocation8 + $0x28] sm:$0xff]
    %v1304 = vld [vmem:[#allocation8 + $0x30] sm:$0xff]
    %v1305 = vld [vmem:[#allocation8 + $0x38] sm:$0xff]
    %v1306 = vld [vmem:[#allocation8 + $0x40] sm:$0xff]
    %v1307 = vld [vmem:[#allocation8 + $0x48] sm:$0xff]
    %v1308 = vld [vmem:[#allocation8 + $0x50] sm:$0xff]
    %v1309 = vld [vmem:[#allocation8 + $0x58] sm:$0xff]
    %v1310 = vld [vmem:[#allocation8 + $0x60] sm:$0xff]
    %v1311 = vld [vmem:[#allocation8 + $0x68] sm:$0xff]
    %v1312 = vld [vmem:[#allocation8 + $0x70] sm:$0xff]
    %v1313 = vld [vmem:[#allocation8 + $0x78] sm:$0xff]
    %v1314 = vld [vmem:[#allocation10] sm:$0x3]
    %v1316 = vperm.slane %v1314, 0
    %v1317 = vperm.slane %v1314, 1
    %v1336 = vunpack.c.l.b16 %v1298
    %v1337 = vunpack.c.h.b16 %v1298
    %v1338 = vunpack.c.l.b16 %v1299
    %v1339 = vunpack.c.h.b16 %v1299
    %v1340 = vunpack.c.l.b16 %v1300
    %v1341 = vunpack.c.h.b16 %v1300
    %v1342 = vunpack.c.l.b16 %v1301
    %v1343 = vunpack.c.h.b16 %v1301
    %v1344 = vunpack.c.l.b16 %v1302
    %v1345 = vunpack.c.h.b16 %v1302
    %v1346 = vunpack.c.l.b16 %v1303
    %v1347 = vunpack.c.h.b16 %v1303
    %v1348 = vunpack.c.l.b16 %v1304
    %v1349 = vunpack.c.h.b16 %v1304
    %v1350 = vunpack.c.l.b16 %v1305
    %v1351 = vunpack.c.h.b16 %v1305
    %v1352 = vunpack.c.l.b16 %v1306
    %v1353 = vunpack.c.h.b16 %v1306
    %v1354 = vunpack.c.l.b16 %v1307
    %v1355 = vunpack.c.h.b16 %v1307
    %v1356 = vunpack.c.l.b16 %v1308
    %v1357 = vunpack.c.h.b16 %v1308
    %v1358 = vunpack.c.l.b16 %v1309
    %v1359 = vunpack.c.h.b16 %v1309
    %v1360 = vunpack.c.l.b16 %v1310
    %v1361 = vunpack.c.h.b16 %v1310
    %v1362 = vunpack.c.l.b16 %v1311
    %v1363 = vunpack.c.h.b16 %v1311
    %v1364 = vunpack.c.l.b16 %v1312
    %v1365 = vunpack.c.h.b16 %v1312
    %v1366 = vunpack.c.l.b16 %v1313
    %v1367 = vunpack.c.h.b16 %v1313
    %v1368 = vpack.c.b16 %v1338, %v1336
    %v1369 = vpack.c.b16 %v1339, %v1337
    %v1370 = vpack.c.b16 %v1342, %v1340
    %v1371 = vpack.c.b16 %v1343, %v1341
    %v1372 = vpack.c.b16 %v1346, %v1344
    %v1373 = vpack.c.b16 %v1347, %v1345
    %v1374 = vpack.c.b16 %v1350, %v1348
    %v1375 = vpack.c.b16 %v1351, %v1349
    %v1376 = vpack.c.b16 %v1354, %v1352
    %v1377 = vpack.c.b16 %v1355, %v1353
    %v1378 = vpack.c.b16 %v1358, %v1356
    %v1379 = vpack.c.b16 %v1359, %v1357
    %v1380 = vpack.c.b16 %v1362, %v1360
    %v1381 = vpack.c.b16 %v1363, %v1361
    %v1382 = vpack.c.b16 %v1366, %v1364
    %v1383 = vpack.c.b16 %v1367, %v1365
    %1400 = vmatpush.bf16.msra.mxu0 %v1382
    %1401 = vmatpush.bf16.msra.mxu0 %v1380
    %1402 = vmatpush.bf16.msra.mxu0 %v1378
    %1403 = vmatpush.bf16.msra.mxu0 %v1376
    %1404 = vmatpush.bf16.msra.mxu0 %v1374
    %1405 = vmatpush.bf16.msra.mxu0 %v1372
    %1406 = vmatpush.bf16.msra.mxu0 %v1370
    %1407 = vmatpush.bf16.msra.mxu0 %v1368
    %1408 = vmatmul.bf16.gmra.mxu0 %v1296
    %v1409 = vpop.f32.mrf.mxu0
    %v1410 = vadd.f32 %v1316, %v1409
    %v1411 = vpop.f32.mrf.mxu0
    %v1412 = vadd.f32 %v1316, %v1411
    %1413 = vmatmul.bf16.gmra.mxu0 %v1297
    %v1414 = vpop.f32.mrf.mxu0
    %v1415 = vadd.f32 %v1316, %v1414
    %v1416 = vpop.f32.mrf.mxu0
    %v1417 = vadd.f32 %v1316, %v1416
    %1418 = vdwg.mxu0
    %1419 = vmatpush.bf16.msra.mxu0 %v1383
    %1420 = vmatpush.bf16.msra.mxu0 %v1381
    %1421 = vmatpush.bf16.msra.mxu0 %v1379
    %1422 = vmatpush.bf16.msra.mxu0 %v1377
    %1423 = vmatpush.bf16.msra.mxu0 %v1375
    %1424 = vmatpush.bf16.msra.mxu0 %v1373
    %1425 = vmatpush.bf16.msra.mxu0 %v1371
    %1426 = vmatpush.bf16.msra.mxu0 %v1369
    %1427 = vmatmul.bf16.gmra.mxu0 %v1296
    %v1428 = vpop.f32.mrf.mxu0
    %v1429 = vadd.f32 %v1317, %v1428
    %v1430 = vpop.f32.mrf.mxu0
    %v1431 = vadd.f32 %v1317, %v1430
    %1432 = vmatmul.bf16.gmra.mxu0 %v1297
    %v1433 = vpop.f32.mrf.mxu0
    %v1434 = vadd.f32 %v1317, %v1433
    %v1435 = vpop.f32.mrf.mxu0
    %v1436 = vadd.f32 %v1317, %v1435
    %1437 = vdwg.mxu0
    %v1438 = vmul.f32 %v1410, 0.5
    %v1439 = vmul.f32 %v1429, 0.5
    %v1440 = vmul.f32 %v1412, 0.5
    %v1441 = vmul.f32 %v1431, 0.5
    %v1442 = vmul.f32 %v1415, 0.5
    %v1443 = vmul.f32 %v1434, 0.5
    %v1444 = vmul.f32 %v1417, 0.5
    %v1445 = vmul.f32 %v1436, 0.5
    %v1446 = vmul.f32 %v1410, 0.044715
    %v1447 = vmul.f32 %v1429, 0.044715
    %v1448 = vmul.f32 %v1412, 0.044715
    %v1449 = vmul.f32 %v1431, 0.044715
    %v1450 = vmul.f32 %v1415, 0.044715
    %v1451 = vmul.f32 %v1434, 0.044715
    %v1452 = vmul.f32 %v1417, 0.044715
    %v1453 = vmul.f32 %v1436, 0.044715
    %v1454 = vmul.f32 %v1446, %v1410
    %v1455 = vmul.f32 %v1447, %v1429
    %v1456 = vmul.f32 %v1448, %v1412
    %v1457 = vmul.f32 %v1449, %v1431
    %v1458 = vmul.f32 %v1450, %v1415
    %v1459 = vmul.f32 %v1451, %v1434
    %v1460 = vmul.f32 %v1452, %v1417
    %v1461 = vmul.f32 %v1453, %v1436
    %v1462 = vmul.f32 %v1454, %v1410
    %v1463 = vmul.f32 %v1455, %v1429
    %v1464 = vmul.f32 %v1456, %v1412
    %v1465 = vmul.f32 %v1457, %v1431
    %v1466 = vmul.f32 %v1458, %v1415
    %v1467 = vmul.f32 %v1459, %v1434
    %v1468 = vmul.f32 %v1460, %v1417
    %v1469 = vmul.f32 %v1461, %v1436
    %v1470 = vadd.f32 %v1410, %v1462
    %v1471 = vadd.f32 %v1429, %v1463
    %v1472 = vadd.f32 %v1412, %v1464
    %v1473 = vadd.f32 %v1431, %v1465
    %v1474 = vadd.f32 %v1415, %v1466
    %v1475 = vadd.f32 %v1434, %v1467
    %v1476 = vadd.f32 %v1417, %v1468
    %v1477 = vadd.f32 %v1436, %v1469
    %v1478 = vmul.f32 %v1470, 0.7978846
    %v1479 = vmul.f32 %v1471, 0.7978846
    %v1480 = vmul.f32 %v1472, 0.7978846
    %v1481 = vmul.f32 %v1473, 0.7978846
    %v1482 = vmul.f32 %v1474, 0.7978846
    %v1483 = vmul.f32 %v1475, 0.7978846
    %v1484 = vmul.f32 %v1476, 0.7978846
    %v1485 = vmul.f32 %v1477, 0.7978846
    %v1486 = vtanh.pop %v1478
    %v1487 = vtanh.pop %v1479
    %v1488 = vtanh.pop %v1480
    %v1489 = vtanh.pop %v1481
    %v1490 = vtanh.pop %v1482
    %v1491 = vtanh.pop %v1483
    %v1492 = vtanh.pop %v1484
    %v1493 = vtanh.pop %v1485
    %v1494 = vadd.f32 %v1486, 1.0
    %v1495 = vadd.f32 %v1487, 1.0
    %v1496 = vadd.f32 %v1488, 1.0
    %v1497 = vadd.f32 %v1489, 1.0
    %v1498 = vadd.f32 %v1490, 1.0
    %v1499 = vadd.f32 %v1491, 1.0
    %v1500 = vadd.f32 %v1492, 1.0
    %v1501 = vadd.f32 %v1493, 1.0
    %v1502 = vmul.f32 %v1438, %v1494
    %v1503 = vmul.f32 %v1439, %v1495
    %v1504 = vmul.f32 %v1440, %v1496
    %v1505 = vmul.f32 %v1441, %v1497
    %v1506 = vmul.f32 %v1442, %v1498
    %v1507 = vmul.f32 %v1443, %v1499
    %v1508 = vmul.f32 %v1444, %v1500
    %v1509 = vmul.f32 %v1445, %v1501
    %v1510 = vpack.c.bf16 %v1504, %v1502
    %v1511 = vpack.c.bf16 %v1505, %v1503
    %v1512 = vpack.c.bf16 %v1508, %v1506
    %v1513 = vpack.c.bf16 %v1509, %v1507
    %v1514 = vld [vmem:[#allocation11] sm:$0xf]
    %v1515 = vld [vmem:[#allocation11 + $0x4] sm:$0xf]
    %v1516 = vld [vmem:[#allocation11 + $0x8] sm:$0xf]
    %v1517 = vld [vmem:[#allocation11 + $0xc] sm:$0xf]
    %v1518 = vld [vmem:[#allocation11 + $0x10] sm:$0xf]
    %v1519 = vld [vmem:[#allocation11 + $0x14] sm:$0xf]
    %v1520 = vld [vmem:[#allocation11 + $0x18] sm:$0xf]
    %v1521 = vld [vmem:[#allocation11 + $0x1c] sm:$0xf]
    %v1522 = vld [vmem:[#allocation11 + $0x20] sm:$0xf]
    %v1523 = vld [vmem:[#allocation11 + $0x24] sm:$0xf]
    %v1524 = vld [vmem:[#allocation11 + $0x28] sm:$0xf]
    %v1525 = vld [vmem:[#allocation11 + $0x2c] sm:$0xf]
    %v1526 = vld [vmem:[#allocation11 + $0x30] sm:$0xf]
    %v1527 = vld [vmem:[#allocation11 + $0x34] sm:$0xf]
    %v1528 = vld [vmem:[#allocation11 + $0x38] sm:$0xf]
    %v1529 = vld [vmem:[#allocation11 + $0x3c] sm:$0xf]
    %v1530 = vld [vmem:[#allocation11 + $0x40] sm:$0xf]
    %v1531 = vld [vmem:[#allocation11 + $0x44] sm:$0xf]
    %v1532 = vld [vmem:[#allocation11 + $0x48] sm:$0xf]
    %v1533 = vld [vmem:[#allocation11 + $0x4c] sm:$0xf]
    %v1534 = vld [vmem:[#allocation11 + $0x50] sm:$0xf]
    %v1535 = vld [vmem:[#allocation11 + $0x54] sm:$0xf]
    %v1536 = vld [vmem:[#allocation11 + $0x58] sm:$0xf]
    %v1537 = vld [vmem:[#allocation11 + $0x5c] sm:$0xf]
    %v1538 = vld [vmem:[#allocation11 + $0x60] sm:$0xf]
    %v1539 = vld [vmem:[#allocation11 + $0x64] sm:$0xf]
    %v1540 = vld [vmem:[#allocation11 + $0x68] sm:$0xf]
    %v1541 = vld [vmem:[#allocation11 + $0x6c] sm:$0xf]
    %v1542 = vld [vmem:[#allocation11 + $0x70] sm:$0xf]
    %v1543 = vld [vmem:[#allocation11 + $0x74] sm:$0xf]
    %v1544 = vld [vmem:[#allocation11 + $0x78] sm:$0xf]
    %v1545 = vld [vmem:[#allocation11 + $0x7c] sm:$0xf]
    %v1546 = vld [vmem:[%s7] sm:$0x1]
    %v1548 = vperm.slane %v1546, 0
    %v1582 = vunpack.c.l.b16 %v1514
    %v1583 = vunpack.c.l.b16 %v1515
    %v1584 = vunpack.c.l.b16 %v1516
    %v1585 = vunpack.c.l.b16 %v1517
    %v1586 = vunpack.c.l.b16 %v1518
    %v1587 = vunpack.c.l.b16 %v1519
    %v1588 = vunpack.c.l.b16 %v1520
    %v1589 = vunpack.c.l.b16 %v1521
    %v1590 = vunpack.c.l.b16 %v1522
    %v1591 = vunpack.c.l.b16 %v1523
    %v1592 = vunpack.c.l.b16 %v1524
    %v1593 = vunpack.c.l.b16 %v1525
    %v1594 = vunpack.c.l.b16 %v1526
    %v1595 = vunpack.c.l.b16 %v1527
    %v1596 = vunpack.c.l.b16 %v1528
    %v1597 = vunpack.c.l.b16 %v1529
    %v1598 = vunpack.c.l.b16 %v1530
    %v1599 = vunpack.c.l.b16 %v1531
    %v1600 = vunpack.c.l.b16 %v1532
    %v1601 = vunpack.c.l.b16 %v1533
    %v1602 = vunpack.c.l.b16 %v1534
    %v1603 = vunpack.c.l.b16 %v1535
    %v1604 = vunpack.c.l.b16 %v1536
    %v1605 = vunpack.c.l.b16 %v1537
    %v1606 = vunpack.c.l.b16 %v1538
    %v1607 = vunpack.c.l.b16 %v1539
    %v1608 = vunpack.c.l.b16 %v1540
    %v1609 = vunpack.c.l.b16 %v1541
    %v1610 = vunpack.c.l.b16 %v1542
    %v1611 = vunpack.c.l.b16 %v1543
    %v1612 = vunpack.c.l.b16 %v1544
    %v1613 = vunpack.c.l.b16 %v1545
    %v1614 = vpack.c.b16 %v1583, %v1582
    %v1615 = vpack.c.b16 %v1585, %v1584
    %v1616 = vpack.c.b16 %v1587, %v1586
    %v1617 = vpack.c.b16 %v1589, %v1588
    %v1618 = vpack.c.b16 %v1591, %v1590
    %v1619 = vpack.c.b16 %v1593, %v1592
    %v1620 = vpack.c.b16 %v1595, %v1594
    %v1621 = vpack.c.b16 %v1597, %v1596
    %v1622 = vpack.c.b16 %v1599, %v1598
    %v1623 = vpack.c.b16 %v1601, %v1600
    %v1624 = vpack.c.b16 %v1603, %v1602
    %v1625 = vpack.c.b16 %v1605, %v1604
    %v1626 = vpack.c.b16 %v1607, %v1606
    %v1627 = vpack.c.b16 %v1609, %v1608
    %v1628 = vpack.c.b16 %v1611, %v1610
    %v1629 = vpack.c.b16 %v1613, %v1612
    %1646 = vmatpush.bf16.msra.mxu0 %v1621
    %1647 = vmatpush.bf16.msra.mxu0 %v1620
    %1648 = vmatpush.bf16.msra.mxu0 %v1619
    %1649 = vmatpush.bf16.msra.mxu0 %v1618
    %1650 = vmatpush.bf16.msra.mxu0 %v1617
    %1651 = vmatpush.bf16.msra.mxu0 %v1616
    %1652 = vmatpush.bf16.msra.mxu0 %v1615
    %1653 = vmatpush.bf16.msra.mxu0 %v1614
    %1654 = vmatmul.bf16.gmra.mxu0 %v1510
    %v1655 = vpop.f32.mrf.mxu0
    %v1656 = vadd.f32 %v1548, %v1655
    %v1657 = vpop.f32.mrf.mxu0
    %v1658 = vadd.f32 %v1548, %v1657
    %1659 = vmatmul.bf16.gmra.mxu0 %v1512
    %v1660 = vpop.f32.mrf.mxu0
    %v1661 = vadd.f32 %v1548, %v1660
    %v1662 = vpop.f32.mrf.mxu0
    %v1663 = vadd.f32 %v1548, %v1662
    %1664 = vdwg.mxu0
    %1665 = vmatpush.bf16.msra.mxu0 %v1629
    %1666 = vmatpush.bf16.msra.mxu0 %v1628
    %1667 = vmatpush.bf16.msra.mxu0 %v1627
    %1668 = vmatpush.bf16.msra.mxu0 %v1626
    %1669 = vmatpush.bf16.msra.mxu0 %v1625
    %1670 = vmatpush.bf16.msra.mxu0 %v1624
    %1671 = vmatpush.bf16.msra.mxu0 %v1623
    %1672 = vmatpush.bf16.msra.mxu0 %v1622
    %1673 = vmatmul.bf16.gmra.mxu0 %v1511
    %v1674 = vpop.f32.mrf.mxu0
    %v1675 = vadd.f32 %v1656, %v1674
    %v1676 = vpop.f32.mrf.mxu0
    %v1677 = vadd.f32 %v1658, %v1676
    %1678 = vmatmul.bf16.gmra.mxu0 %v1513
    %v1679 = vpop.f32.mrf.mxu0
    %v1680 = vadd.f32 %v1661, %v1679
    %v1681 = vpop.f32.mrf.mxu0
    %v1682 = vadd.f32 %v1663, %v1681
    %1683 = vdwg.mxu0
    %v1684 = vadd.f32 %v1196, %v1675
    %v1685 = vadd.f32 %v1197, %v1677
    %v1686 = vadd.f32 %v1198, %v1680
    %v1687 = vadd.f32 %v1199, %v1682
    %1688 = vst [vmem:[#allocation16] sm:$0xff] %v1684
    %1689 = vst [vmem:[#allocation16 + $0x8] sm:$0xff] %v1685
    %1690 = vst [vmem:[#allocation16 + $0x10] sm:$0xff] %v1686
    %1691 = vst [vmem:[#allocation16 + $0x18] sm:$0xff] %v1687
    // Predicated region
    $region82: #{prenorm_block.1} parent=1 // pred_check
      _
    $region83: #{prenorm_block.1} parent=1 // pred_check_branch
      %1693 = sbr.rel (0) target = $region85
    $region84: #{prenorm_block.1} parent=1 // pred_region
      %1695 = vsyncadd [#allocation4], 0
      %s1696 = sshll.u32 [#allocation16], 4
      %s1697 = int_to_ptr.vmem [resolvable:$true] %s1696
      %s1698 = sshll.u32 %s12, 4
      %s1699 = int_to_ptr.hbm [resolvable:$true] %s1698
      %1704 = dma.vmem_to_hbm [thread:$0]  %s1697, 512, %s1699, [#allocation4], 128, 128, 8
    $region85: #{prenorm_block.1} parent=1 // pred_fallthru
      _
    // Predicated region
    $region86: #{prenorm_block.1} parent=1 // pred_check
      _
    $region87: #{prenorm_block.1} parent=1 // pred_check_branch
      %1706 = sbr.rel (0) target = $region89
    $region88: #{prenorm_block.1} parent=1 // pred_region
      %1708 = dma.done [#allocation4], 512
    $region89: #{prenorm_block.1} parent=1 // pred_fallthru
      _
    %1709 = vsyncpa [#allocation3], 1
    %1710 = vsyncpa [#allocation6], 1
    %1711 = vsyncpa [#allocation9], 1
    %1712 = vsyncpa [#allocation12], 1
    %1713 = vsyncpa [#allocation15], 1
    %1714 = vsyncpa [#allocation4], 1

</llo_original>
